<compile_context>
chip_gen: v5e
topology: v5e:2x2
jax: 0.10.0
libtpu: 0.0.40
codegen_flags: <defaults>
</compile_context>

<pallas_src>
import functools
import math

import jax
import jax.numpy as jnp
from jax import lax
from jax.experimental import pallas as pl
from jax.experimental.pallas import tpu as pltpu

STANDARD_SIZE = 1000.0


def _spinal_kernel(hm_ref, tpl_ref, comb_ref, par_ref, out_ref, *, H, W, T):
    """Per-batch body.  Shapes (batch dim squeezed by the BlockSpecs):
         hm_ref   : (P, H*W)   f32  flattened heatmaps (flat index = h*W + w)
         tpl_ref  : (2*T, P)   f32  rows [0,T)  = template x * W/1000,
                                    rows [T,2T) = template y * H/1000
         comb_ref : (C, T)     f32  softmax linear-combination weights
         par_ref  : (C, 5)     f32  per-candidate (cos, sin, scale, shx, shy)
         out_ref  : (2, P_pad) i32  row 0 = width idx, row 1 = height idx
    """
    f32 = jnp.float32
    P, HW = hm_ref.shape
    C = comb_ref.shape[0]
    P_pad = out_ref.shape[1]

    hm = hm_ref[...]                                           # (P, HW)

    # One HW-wide iota, shared by the argmax and the score gather.
    hw_iota = lax.broadcasted_iota(jnp.int32, (1, HW), 1)

    # ---- SpinalModelBase.forward: per-point argmax over H*W --------------
    mmax = jnp.max(hm, axis=1, keepdims=True)                  # (P, 1)
    idx = jnp.min(jnp.where(hm == mmax, hw_iota, HW), axis=1, keepdims=True)
    idx = jnp.minimum(idx, HW - 1)                             # all-NaN row guard
    idx_f = idx.astype(f32)
    # f32 divide is exact while H*W < 2^24.
    # TODO(synk): switch to integer index math for very large heatmaps.
    pred_y = jnp.floor(idx_f / float(W))                       # (P, 1) height idx
    pred_x = idx_f - pred_y * float(W)                         # (P, 1) width idx

    # ---- cal_vertical_angle -> cos/sin of (-v_angle), division-free ------
    mx = jnp.mean(pred_x, axis=0, keepdims=True)               # (1, 1)
    my = jnp.mean(pred_y, axis=0, keepdims=True)
    xc = pred_x - mx
    yc = pred_y - my
    xx = jnp.sum(xc * xc, axis=0, keepdims=True)
    xy = jnp.sum(xc * yc, axis=0, keepdims=True)
    yy = jnp.sum(yc * yc, axis=0, keepdims=True)
    lamb = (xx + yy - jnp.sqrt((xx - yy) ** 2 + 4.0 * xy * xy)) * 0.5
    num = lamb - xx                                            # tan(v) = num / xy
    den = xy
    rmag = jnp.sqrt(num * num + den * den)
    inv_r = 1.0 / jnp.maximum(rmag, 1e-30)
    ok = rmag > 0.0
    sgn_den = jnp.where(den >= 0.0, 1.0, -1.0)
    ca = jnp.where(ok, jnp.abs(den) * inv_r, 1.0)              # cos(-v_angle)
    sa = jnp.where(ok, -num * sgn_den * inv_r, 0.0)            # sin(-v_angle)

    # ---- transform_templates + linear_combination (no MXU) ---------------
    # rtx = ca*tx - sa*ty + mx ; cand_x = comb @ rtx.  Rotation/recenter are
    # per-batch, so hoist them out of the T-contraction and run the K=T
    # contraction as an unrolled VPU broadcast-FMA.
    comb = comb_ref[...]                                       # (C, T)
    rowsum = jnp.sum(comb, axis=1, keepdims=True)              # (C, 1), == 1
    u = comb[:, 0:1] * tpl_ref[pl.ds(0, 1), :]                 # (C, P)
    v = comb[:, 0:1] * tpl_ref[pl.ds(T, 1), :]
    for t in range(1, T):
        u = u + comb[:, t:t + 1] * tpl_ref[pl.ds(t, 1), :]
        v = v + comb[:, t:t + 1] * tpl_ref[pl.ds(T + t, 1), :]
    cand_x = ca * u - sa * v + mx * rowsum                     # (C, P)
    cand_y = sa * u + ca * v + my * rowsum

    # ---- transform_candidates: scale, rotate about centers, shift --------
    # NOTE: lane-packing x/y into (C, 2P) was evaluated but skipped: at P=8
    # the non-128-aligned lane concats / swaps cost more than the halved VALU
    # work; revisit for large P.
    par = par_ref[...]                                         # (C, 5)
    cb = par[:, 0:1]
    sb = par[:, 1:2]
    scale = par[:, 2:3]
    shx = par[:, 3:4]
    shy = par[:, 4:5]
    cx = jnp.mean(cand_x, axis=1, keepdims=True)               # (C, 1)
    cy = jnp.mean(cand_y, axis=1, keepdims=True)
    dx = cand_x * scale - cx
    dy = cand_y * scale - cy
    rx = cb * dx - sb * dy + cx
    ry = sb * dx + cb * dy + cy
    rx = rx + (cx + shx - jnp.mean(rx, axis=1, keepdims=True))
    ry = ry + (cy + shy - jnp.mean(ry, axis=1, keepdims=True))

    # .long() (truncate toward zero) then clamp to image bounds
    ix = jnp.clip(rx.astype(jnp.int32), 0, W - 1)              # (C, P)
    iy = jnp.clip(ry.astype(jnp.int32), 0, H - 1)
    flat = iy * W + ix                                         # (C, P)

    # ---- score_candidates: gather heatmap values, product over points ----
    # Static P loop; the per-point heatmap row is re-read from VMEM (vld slot
    # has slack) instead of XLU-slicing the in-register hm value.
    # TODO(synk): for large H*W use a windowed gather or an SMEM scalar gather.
    score = jnp.ones((C, 1), f32)
    for p in range(P):
        idx_p = flat[:, p:p + 1]                               # (C, 1)
        hm_p = hm_ref[pl.ds(p, 1), :]                          # (1, HW)
        val_p = jnp.sum(jnp.where(hw_iota == idx_p, hm_p, 0.0),
                        axis=1, keepdims=True)                 # (C, 1)
        score = score * val_p

    # ---- first argmax over candidates; select winner ---------------------
    smax = jnp.max(score, axis=0, keepdims=True)               # (1, 1)
    c_iota = lax.broadcasted_iota(jnp.int32, (C, 1), 0)
    best = jnp.min(jnp.where(score == smax, c_iota, C), axis=0, keepdims=True)
    sel = c_iota == best                                       # (C, 1)
    best_x = jnp.sum(jnp.where(sel, ix, 0), axis=0, keepdims=True)   # (1, P)
    best_y = jnp.sum(jnp.where(sel, iy, 0), axis=0, keepdims=True)   # (1, P)

    # Single lane-dense, fully-initialized output block (one unmasked store).
    xy = jnp.concatenate([best_x, best_y], axis=0)             # (2, P) i32
    if P_pad > P:
        xy = jnp.concatenate(
            [xy, jnp.zeros((2, P_pad - P), jnp.int32)], axis=1)
    out_ref[...] = xy


def spinal_model_forward(heatmaps, templates, comb_w, cos_a, sin_a,
                         scales, shift_x, shift_y):
    """heatmaps: (B, P, H, W) f32; templates: (T, P, 2) f32 in STANDARD_SIZE
    coordinates; comb_w: (B, C, T); cos_a/sin_a/scales/shift_x/shift_y: (B, C).
    Returns (B, P, 2) int32 with [..., 0] = width idx, [..., 1] = height idx."""
    B, P, H, W = heatmaps.shape
    T = templates.shape[0]
    C = comb_w.shape[1]
    P_pad = ((P + 127) // 128) * 128                           # lane-dense output

    # TODO(synk): if upstream heatmaps are bf16, DMA them as bf16 and upcast
    # in-kernel (halves the dominant HBM->VMEM transfer); they are f32 here.
    hm_flat = heatmaps.reshape(B, P, H * W).astype(jnp.float32)
    # Scale templates to image size here (batch-independent, static) and pack
    # x rows on top of y rows -> (2T, P).
    tx = templates[:, :, 0].astype(jnp.float32) * (float(W) / STANDARD_SIZE)
    ty = templates[:, :, 1].astype(jnp.float32) * (float(H) / STANDARD_SIZE)
    tpl = jnp.concatenate([tx, ty], axis=0)                    # (2T, P)
    params = jnp.stack([cos_a, sin_a, scales, shift_x, shift_y],
                       axis=-1).astype(jnp.float32)            # (B, C, 5)

    kernel = functools.partial(_spinal_kernel, H=H, W=W, T=T)
    out = pl.pallas_call(
        kernel,
        out_shape=jax.ShapeDtypeStruct((B, 2, P_pad), jnp.int32),
        grid=(B,),                                             # one batch / step
        in_specs=[
            pl.BlockSpec((None, P, H * W), lambda b: (b, 0, 0)),   # heatmaps
            pl.BlockSpec((2 * T, P), lambda b: (0, 0)),            # templates
            pl.BlockSpec((None, C, T), lambda b: (b, 0, 0)),       # comb weights
            pl.BlockSpec((None, C, 5), lambda b: (b, 0, 0)),       # cand params
        ],
        out_specs=pl.BlockSpec((None, 2, P_pad), lambda b: (b, 0, 0)),
        compiler_params=pltpu.CompilerParams(
            dimension_semantics=("parallel",)),                # v7x: 2 TCs split B
    )(hm_flat, tpl, comb_w.astype(jnp.float32), params)

    # (B, P, 2) with [:, :, 0] = width index, [:, :, 1] = height index.
    return jnp.stack([out[:, 0, :P], out[:, 1, :P]], axis=-1)


if __name__ == "__main__":
    # Small shapes consistent with the module's forward:
    B, P, H, W = 2, 8, 16, 16          # (num_batch, num_points, height, width)
    T, C, S = 4, 32, 4                 # num_templates, num_candidates, num_selected
    MAX_ANGEL = 10
    SCALE_RANGE = (0.9, 1.1)
    MAX_TRANSLATION = 0.05

    key = jax.random.PRNGKey(0)
    k_hm, k_tpl, k_idx, k_w, k_ang, k_scl, k_shf = jax.random.split(key, 7)

    # Heatmaps: background noise + deterministic spine-like peaks.
    heatmaps = jax.random.uniform(k_hm, (B, P, H, W), jnp.float32) * 0.5
    ys = jnp.arange(P) * 2 + 1
    xs = 5 + (jnp.arange(P) % 3)
    peak = jnp.zeros((P, H, W), jnp.float32).at[jnp.arange(P), ys, xs].set(2.0)
    heatmaps = heatmaps + peak[None]

    # Deterministic synthetic templates in STANDARD_SIZE (=1000) coordinates.
    base = jnp.stack([jnp.zeros(P), jnp.linspace(-350.0, 350.0, P)], axis=-1)
    templates = base[None] + jax.random.normal(k_tpl, (T, P, 2)) * 15.0

    # Per-batch random draws (glue; mirrors torch.rand / torch.randint calls).
    indices = jax.random.randint(k_idx, (B, C, S), 0, T)
    soft_w = jax.nn.softmax(jax.random.uniform(k_w, (B, C, S)), axis=-1)
    comb_w = jnp.sum(soft_w[..., None] * jax.nn.one_hot(indices, T), axis=2)  # (B, C, T)

    angles = jax.random.randint(k_ang, (B, C), -MAX_ANGEL, MAX_ANGEL).astype(jnp.float32)
    rad = angles * (math.pi / 180.0)
    cos_a = jnp.cos(rad)                                                      # (B, C)
    sin_a = jnp.sin(rad)
    scales = (jax.random.uniform(k_scl, (B, C))
              * (SCALE_RANGE[1] - SCALE_RANGE[0]) + SCALE_RANGE[0])
    shift = ((jax.random.uniform(k_shf, (B, C, 2)) - 0.5) * 2.0 * MAX_TRANSLATION
             * jnp.array([W, H], jnp.float32))
    shift_x = shift[:, :, 0]
    shift_y = shift[:, :, 1]

    preds = spinal_model_forward(heatmaps, templates, comb_w, cos_a, sin_a,
                                 scales, shift_x, shift_y)
    preds = jax.block_until_ready(preds)

    assert preds.shape == (B, P, 2)
    assert bool(jnp.all(preds[:, :, 0] >= 0)) and bool(jnp.all(preds[:, :, 0] < W))
    assert bool(jnp.all(preds[:, :, 1] >= 0)) and bool(jnp.all(preds[:, :, 1] < H))
    print("KERNEL_OK")
</pallas_src>

<mosaic_0001>
module attributes {stable_mosaic.version = 11 : i64} {
  func.func @_spinal_kernel(%arg0: i32, %arg1: memref<1x8x256xf32, #tpu.memory_space<vmem>>, %arg2: memref<8x8xf32, #tpu.memory_space<vmem>>, %arg3: memref<1x32x4xf32, #tpu.memory_space<vmem>>, %arg4: memref<1x32x5xf32, #tpu.memory_space<vmem>>, %arg5: memref<1x2x128xi32, #tpu.memory_space<vmem>>) attributes {dimension_semantics = [#tpu.dimension_semantics<parallel>], iteration_bounds = array<i64: 2>, scalar_prefetch = 0 : i64, scratch_operands = 0 : i64, tpu.core_type = #tpu.core_type<tc>, window_params = [{transform_indices = @transform_0, window_bounds = array<i64: 1, 8, 256>}, {pipeline_mode = #tpu.pipeline_mode<synchronous>, transform_indices = @transform_1, window_bounds = array<i64: 8, 8>}, {transform_indices = @transform_2, window_bounds = array<i64: 1, 32, 4>}, {transform_indices = @transform_3, window_bounds = array<i64: 1, 32, 5>}, {transform_indices = @transform_4, window_bounds = array<i64: 1, 2, 128>}]} {
    %c0 = arith.constant 0 : index
    %c0_0 = arith.constant 0 : index
    %c0_1 = arith.constant 0 : index
    %0 = vector.load %arg1[%c0, %c0_0, %c0_1] : memref<1x8x256xf32, #tpu.memory_space<vmem>>, vector<1x8x256xf32>
    %1 = vector.shape_cast %0 : vector<1x8x256xf32> to vector<8x256xf32>
    %2 = tpu.iota {dimensions = array<i32: 1>} : vector<1x256xi32>
    %cst = arith.constant dense<0xFF800000> : vector<8xf32>
    %3 = vector.multi_reduction <maximumf>, %1, %cst [1] : vector<8x256xf32> to vector<8xf32>
    %4 = vector.shape_cast %3 : vector<8xf32> to vector<8x1xf32>
    %5 = vector.broadcast %4 : vector<8x1xf32> to vector<8x256xf32>
    %6 = arith.cmpf oeq, %1, %5 : vector<8x256xf32>
    %c256_i32 = arith.constant 256 : i32
    %7 = vector.shape_cast %2 : vector<1x256xi32> to vector<1x256xi32>
    %8 = vector.broadcast %7 : vector<1x256xi32> to vector<8x256xi32>
    %9 = vector.broadcast %c256_i32 : i32 to vector<8x256xi32>
    %10 = arith.select %6, %8, %9 : vector<8x256xi1>, vector<8x256xi32>
    %cst_2 = arith.constant dense<2147483647> : vector<8xi32>
    %11 = vector.multi_reduction <minsi>, %10, %cst_2 [1] : vector<8x256xi32> to vector<8xi32>
    %12 = vector.shape_cast %11 : vector<8xi32> to vector<8x1xi32>
    %c255_i32 = arith.constant 255 : i32
    %13 = vector.broadcast %c255_i32 : i32 to vector<8x1xi32>
    %14 = arith.minsi %12, %13 : vector<8x1xi32>
    %15 = arith.sitofp %14 : vector<8x1xi32> to vector<8x1xf32>
    %cst_3 = arith.constant 1.600000e+01 : f32
    %16 = vector.broadcast %cst_3 : f32 to vector<8x1xf32>
    %17 = arith.divf %15, %16 : vector<8x1xf32>
    %18 = math.floor %17 : vector<8x1xf32>
    %cst_4 = arith.constant 1.600000e+01 : f32
    %19 = vector.broadcast %cst_4 : f32 to vector<8x1xf32>
    %20 = arith.mulf %18, %19 : vector<8x1xf32>
    %21 = arith.subf %15, %20 : vector<8x1xf32>
    %cst_5 = arith.constant dense<0.000000e+00> : vector<1xf32>
    %22 = vector.multi_reduction <add>, %21, %cst_5 [0] : vector<8x1xf32> to vector<1xf32>
    %23 = vector.shape_cast %22 : vector<1xf32> to vector<1x1xf32>
    %cst_6 = arith.constant 8.000000e+00 : f32
    %24 = vector.broadcast %cst_6 : f32 to vector<1x1xf32>
    %25 = arith.divf %23, %24 : vector<1x1xf32>
    %cst_7 = arith.constant dense<0.000000e+00> : vector<1xf32>
    %26 = vector.multi_reduction <add>, %18, %cst_7 [0] : vector<8x1xf32> to vector<1xf32>
    %27 = vector.shape_cast %26 : vector<1xf32> to vector<1x1xf32>
    %cst_8 = arith.constant 8.000000e+00 : f32
    %28 = vector.broadcast %cst_8 : f32 to vector<1x1xf32>
    %29 = arith.divf %27, %28 : vector<1x1xf32>
    %30 = vector.broadcast %25 : vector<1x1xf32> to vector<8x1xf32>
    %31 = arith.subf %21, %30 : vector<8x1xf32>
    %32 = vector.broadcast %29 : vector<1x1xf32> to vector<8x1xf32>
    %33 = arith.subf %18, %32 : vector<8x1xf32>
    %34 = arith.mulf %31, %31 : vector<8x1xf32>
    %cst_9 = arith.constant dense<0.000000e+00> : vector<1xf32>
    %35 = vector.multi_reduction <add>, %34, %cst_9 [0] : vector<8x1xf32> to vector<1xf32>
    %36 = vector.shape_cast %35 : vector<1xf32> to vector<1x1xf32>
    %37 = arith.mulf %31, %33 : vector<8x1xf32>
    %cst_10 = arith.constant dense<0.000000e+00> : vector<1xf32>
    %38 = vector.multi_reduction <add>, %37, %cst_10 [0] : vector<8x1xf32> to vector<1xf32>
    %39 = vector.shape_cast %38 : vector<1xf32> to vector<1x1xf32>
    %40 = arith.mulf %33, %33 : vector<8x1xf32>
    %cst_11 = arith.constant dense<0.000000e+00> : vector<1xf32>
    %41 = vector.multi_reduction <add>, %40, %cst_11 [0] : vector<8x1xf32> to vector<1xf32>
    %42 = vector.shape_cast %41 : vector<1xf32> to vector<1x1xf32>
    %43 = arith.addf %36, %42 : vector<1x1xf32>
    %44 = arith.subf %36, %42 : vector<1x1xf32>
    %45 = arith.mulf %44, %44 : vector<1x1xf32>
    %cst_12 = arith.constant 4.000000e+00 : f32
    %46 = vector.broadcast %cst_12 : f32 to vector<1x1xf32>
    %47 = arith.mulf %46, %39 : vector<1x1xf32>
    %48 = arith.mulf %47, %39 : vector<1x1xf32>
    %49 = arith.addf %45, %48 : vector<1x1xf32>
    %50 = math.sqrt %49 : vector<1x1xf32>
    %51 = arith.subf %43, %50 : vector<1x1xf32>
    %cst_13 = arith.constant 5.000000e-01 : f32
    %52 = vector.broadcast %cst_13 : f32 to vector<1x1xf32>
    %53 = arith.mulf %51, %52 : vector<1x1xf32>
    %54 = arith.subf %53, %36 : vector<1x1xf32>
    %55 = arith.mulf %54, %54 : vector<1x1xf32>
    %56 = arith.mulf %39, %39 : vector<1x1xf32>
    %57 = arith.addf %55, %56 : vector<1x1xf32>
    %58 = math.sqrt %57 : vector<1x1xf32>
    %cst_14 = arith.constant 1.000000e-30 : f32
    %59 = vector.broadcast %cst_14 : f32 to vector<1x1xf32>
    %60 = arith.maximumf %58, %59 : vector<1x1xf32>
    %cst_15 = arith.constant 1.000000e+00 : f32
    %61 = vector.broadcast %cst_15 : f32 to vector<1x1xf32>
    %62 = arith.divf %61, %60 : vector<1x1xf32>
    %cst_16 = arith.constant 0.000000e+00 : f32
    %63 = vector.broadcast %cst_16 : f32 to vector<1x1xf32>
    %64 = arith.cmpf ogt, %58, %63 : vector<1x1xf32>
    %cst_17 = arith.constant 0.000000e+00 : f32
    %65 = vector.broadcast %cst_17 : f32 to vector<1x1xf32>
    %66 = arith.cmpf oge, %39, %65 : vector<1x1xf32>
    %cst_18 = arith.constant 1.000000e+00 : f32
    %cst_19 = arith.constant -1.000000e+00 : f32
    %67 = vector.broadcast %cst_18 : f32 to vector<1x1xf32>
    %68 = vector.broadcast %cst_19 : f32 to vector<1x1xf32>
    %69 = arith.select %66, %67, %68 : vector<1x1xi1>, vector<1x1xf32>
    %70 = math.absf %39 : vector<1x1xf32>
    %71 = arith.mulf %70, %62 : vector<1x1xf32>
    %cst_20 = arith.constant 1.000000e+00 : f32
    %72 = vector.broadcast %cst_20 : f32 to vector<1x1xf32>
    %73 = arith.select %64, %71, %72 : vector<1x1xi1>, vector<1x1xf32>
    %cst_21 = arith.constant 0.000000e+00 : f32
    %74 = vector.broadcast %cst_21 : f32 to vector<1x1xf32>
    %75 = arith.subf %74, %54 : vector<1x1xf32>
    %76 = arith.mulf %75, %69 : vector<1x1xf32>
    %77 = arith.mulf %76, %62 : vector<1x1xf32>
    %cst_22 = arith.constant 0.000000e+00 : f32
    %78 = vector.broadcast %cst_22 : f32 to vector<1x1xf32>
    %79 = arith.select %64, %77, %78 : vector<1x1xi1>, vector<1x1xf32>
    %c0_23 = arith.constant 0 : index
    %c0_24 = arith.constant 0 : index
    %c0_25 = arith.constant 0 : index
    %80 = vector.load %arg3[%c0_23, %c0_24, %c0_25] : memref<1x32x4xf32, #tpu.memory_space<vmem>>, vector<1x32x4xf32>
    %81 = vector.shape_cast %80 : vector<1x32x4xf32> to vector<32x4xf32>
    %cst_26 = arith.constant dense<0.000000e+00> : vector<32xf32>
    %82 = vector.multi_reduction <add>, %81, %cst_26 [1] : vector<32x4xf32> to vector<32xf32>
    %83 = vector.shape_cast %82 : vector<32xf32> to vector<32x1xf32>
    %84 = vector.extract_strided_slice %81 {offsets = [0, 0], sizes = [32, 1], strides = [1, 1]} : vector<32x4xf32> to vector<32x1xf32>
    %c0_27 = arith.constant 0 : index
    %c0_28 = arith.constant 0 : index
    %85 = vector.load %arg2[%c0_27, %c0_28] : memref<8x8xf32, #tpu.memory_space<vmem>>, vector<1x8xf32>
    %86 = vector.broadcast %84 : vector<32x1xf32> to vector<32x8xf32>
    %87 = vector.broadcast %85 : vector<1x8xf32> to vector<32x8xf32>
    %88 = arith.mulf %86, %87 : vector<32x8xf32>
    %89 = vector.extract_strided_slice %81 {offsets = [0, 0], sizes = [32, 1], strides = [1, 1]} : vector<32x4xf32> to vector<32x1xf32>
    %c4 = arith.constant 4 : index
    %c0_29 = arith.constant 0 : index
    %90 = vector.load %arg2[%c4, %c0_29] : memref<8x8xf32, #tpu.memory_space<vmem>>, vector<1x8xf32>
    %91 = vector.broadcast %89 : vector<32x1xf32> to vector<32x8xf32>
    %92 = vector.broadcast %90 : vector<1x8xf32> to vector<32x8xf32>
    %93 = arith.mulf %91, %92 : vector<32x8xf32>
    %94 = vector.extract_strided_slice %81 {offsets = [0, 1], sizes = [32, 1], strides = [1, 1]} : vector<32x4xf32> to vector<32x1xf32>
    %c1 = arith.constant 1 : index
    %c0_30 = arith.constant 0 : index
    %95 = vector.load %arg2[%c1, %c0_30] : memref<8x8xf32, #tpu.memory_space<vmem>>, vector<1x8xf32>
    %96 = vector.broadcast %94 : vector<32x1xf32> to vector<32x8xf32>
    %97 = vector.broadcast %95 : vector<1x8xf32> to vector<32x8xf32>
    %98 = arith.mulf %96, %97 : vector<32x8xf32>
    %99 = arith.addf %88, %98 : vector<32x8xf32>
    %100 = vector.extract_strided_slice %81 {offsets = [0, 1], sizes = [32, 1], strides = [1, 1]} : vector<32x4xf32> to vector<32x1xf32>
    %c5 = arith.constant 5 : index
    %c0_31 = arith.constant 0 : index
    %101 = vector.load %arg2[%c5, %c0_31] : memref<8x8xf32, #tpu.memory_space<vmem>>, vector<1x8xf32>
    %102 = vector.broadcast %100 : vector<32x1xf32> to vector<32x8xf32>
    %103 = vector.broadcast %101 : vector<1x8xf32> to vector<32x8xf32>
    %104 = arith.mulf %102, %103 : vector<32x8xf32>
    %105 = arith.addf %93, %104 : vector<32x8xf32>
    %106 = vector.extract_strided_slice %81 {offsets = [0, 2], sizes = [32, 1], strides = [1, 1]} : vector<32x4xf32> to vector<32x1xf32>
    %c2 = arith.constant 2 : index
    %c0_32 = arith.constant 0 : index
    %107 = vector.load %arg2[%c2, %c0_32] : memref<8x8xf32, #tpu.memory_space<vmem>>, vector<1x8xf32>
    %108 = vector.broadcast %106 : vector<32x1xf32> to vector<32x8xf32>
    %109 = vector.broadcast %107 : vector<1x8xf32> to vector<32x8xf32>
    %110 = arith.mulf %108, %109 : vector<32x8xf32>
    %111 = arith.addf %99, %110 : vector<32x8xf32>
    %112 = vector.extract_strided_slice %81 {offsets = [0, 2], sizes = [32, 1], strides = [1, 1]} : vector<32x4xf32> to vector<32x1xf32>
    %c6 = arith.constant 6 : index
    %c0_33 = arith.constant 0 : index
    %113 = vector.load %arg2[%c6, %c0_33] : memref<8x8xf32, #tpu.memory_space<vmem>>, vector<1x8xf32>
    %114 = vector.broadcast %112 : vector<32x1xf32> to vector<32x8xf32>
    %115 = vector.broadcast %113 : vector<1x8xf32> to vector<32x8xf32>
    %116 = arith.mulf %114, %115 : vector<32x8xf32>
    %117 = arith.addf %105, %116 : vector<32x8xf32>
    %118 = vector.extract_strided_slice %81 {offsets = [0, 3], sizes = [32, 1], strides = [1, 1]} : vector<32x4xf32> to vector<32x1xf32>
    %c3 = arith.constant 3 : index
    %c0_34 = arith.constant 0 : index
    %119 = vector.load %arg2[%c3, %c0_34] : memref<8x8xf32, #tpu.memory_space<vmem>>, vector<1x8xf32>
    %120 = vector.broadcast %118 : vector<32x1xf32> to vector<32x8xf32>
    %121 = vector.broadcast %119 : vector<1x8xf32> to vector<32x8xf32>
    %122 = arith.mulf %120, %121 : vector<32x8xf32>
    %123 = arith.addf %111, %122 : vector<32x8xf32>
    %124 = vector.extract_strided_slice %81 {offsets = [0, 3], sizes = [32, 1], strides = [1, 1]} : vector<32x4xf32> to vector<32x1xf32>
    %c7 = arith.constant 7 : index
    %c0_35 = arith.constant 0 : index
    %125 = vector.load %arg2[%c7, %c0_35] : memref<8x8xf32, #tpu.memory_space<vmem>>, vector<1x8xf32>
    %126 = vector.broadcast %124 : vector<32x1xf32> to vector<32x8xf32>
    %127 = vector.broadcast %125 : vector<1x8xf32> to vector<32x8xf32>
    %128 = arith.mulf %126, %127 : vector<32x8xf32>
    %129 = arith.addf %117, %128 : vector<32x8xf32>
    %130 = vector.broadcast %73 : vector<1x1xf32> to vector<32x8xf32>
    %131 = arith.mulf %130, %123 : vector<32x8xf32>
    %132 = vector.broadcast %79 : vector<1x1xf32> to vector<32x8xf32>
    %133 = arith.mulf %132, %129 : vector<32x8xf32>
    %134 = arith.subf %131, %133 : vector<32x8xf32>
    %135 = vector.broadcast %25 : vector<1x1xf32> to vector<32x1xf32>
    %136 = arith.mulf %135, %83 : vector<32x1xf32>
    %137 = vector.broadcast %136 : vector<32x1xf32> to vector<32x8xf32>
    %138 = arith.addf %134, %137 : vector<32x8xf32>
    %139 = vector.broadcast %79 : vector<1x1xf32> to vector<32x8xf32>
    %140 = arith.mulf %139, %123 : vector<32x8xf32>
    %141 = vector.broadcast %73 : vector<1x1xf32> to vector<32x8xf32>
    %142 = arith.mulf %141, %129 : vector<32x8xf32>
    %143 = arith.addf %140, %142 : vector<32x8xf32>
    %144 = vector.broadcast %29 : vector<1x1xf32> to vector<32x1xf32>
    %145 = arith.mulf %144, %83 : vector<32x1xf32>
    %146 = vector.broadcast %145 : vector<32x1xf32> to vector<32x8xf32>
    %147 = arith.addf %143, %146 : vector<32x8xf32>
    %c0_36 = arith.constant 0 : index
    %c0_37 = arith.constant 0 : index
    %c0_38 = arith.constant 0 : index
    %148 = vector.load %arg4[%c0_36, %c0_37, %c0_38] : memref<1x32x5xf32, #tpu.memory_space<vmem>>, vector<1x32x5xf32>
    %149 = vector.shape_cast %148 : vector<1x32x5xf32> to vector<32x5xf32>
    %150 = vector.extract_strided_slice %149 {offsets = [0, 0], sizes = [32, 1], strides = [1, 1]} : vector<32x5xf32> to vector<32x1xf32>
    %151 = vector.extract_strided_slice %149 {offsets = [0, 1], sizes = [32, 1], strides = [1, 1]} : vector<32x5xf32> to vector<32x1xf32>
    %152 = vector.extract_strided_slice %149 {offsets = [0, 2], sizes = [32, 1], strides = [1, 1]} : vector<32x5xf32> to vector<32x1xf32>
    %153 = vector.extract_strided_slice %149 {offsets = [0, 3], sizes = [32, 1], strides = [1, 1]} : vector<32x5xf32> to vector<32x1xf32>
    %154 = vector.extract_strided_slice %149 {offsets = [0, 4], sizes = [32, 1], strides = [1, 1]} : vector<32x5xf32> to vector<32x1xf32>
    %cst_39 = arith.constant dense<0.000000e+00> : vector<32xf32>
    %155 = vector.multi_reduction <add>, %138, %cst_39 [1] : vector<32x8xf32> to vector<32xf32>
    %156 = vector.shape_cast %155 : vector<32xf32> to vector<32x1xf32>
    %cst_40 = arith.constant 8.000000e+00 : f32
    %157 = vector.broadcast %cst_40 : f32 to vector<32x1xf32>
    %158 = arith.divf %156, %157 : vector<32x1xf32>
    %cst_41 = arith.constant dense<0.000000e+00> : vector<32xf32>
    %159 = vector.multi_reduction <add>, %147, %cst_41 [1] : vector<32x8xf32> to vector<32xf32>
    %160 = vector.shape_cast %159 : vector<32xf32> to vector<32x1xf32>
    %cst_42 = arith.constant 8.000000e+00 : f32
    %161 = vector.broadcast %cst_42 : f32 to vector<32x1xf32>
    %162 = arith.divf %160, %161 : vector<32x1xf32>
    %163 = vector.broadcast %152 : vector<32x1xf32> to vector<32x8xf32>
    %164 = arith.mulf %138, %163 : vector<32x8xf32>
    %165 = vector.broadcast %158 : vector<32x1xf32> to vector<32x8xf32>
    %166 = arith.subf %164, %165 : vector<32x8xf32>
    %167 = vector.broadcast %152 : vector<32x1xf32> to vector<32x8xf32>
    %168 = arith.mulf %147, %167 : vector<32x8xf32>
    %169 = vector.broadcast %162 : vector<32x1xf32> to vector<32x8xf32>
    %170 = arith.subf %168, %169 : vector<32x8xf32>
    %171 = vector.broadcast %150 : vector<32x1xf32> to vector<32x8xf32>
    %172 = arith.mulf %171, %166 : vector<32x8xf32>
    %173 = vector.broadcast %151 : vector<32x1xf32> to vector<32x8xf32>
    %174 = arith.mulf %173, %170 : vector<32x8xf32>
    %175 = arith.subf %172, %174 : vector<32x8xf32>
    %176 = vector.broadcast %158 : vector<32x1xf32> to vector<32x8xf32>
    %177 = arith.addf %175, %176 : vector<32x8xf32>
    %178 = vector.broadcast %151 : vector<32x1xf32> to vector<32x8xf32>
    %179 = arith.mulf %178, %166 : vector<32x8xf32>
    %180 = vector.broadcast %150 : vector<32x1xf32> to vector<32x8xf32>
    %181 = arith.mulf %180, %170 : vector<32x8xf32>
    %182 = arith.addf %179, %181 : vector<32x8xf32>
    %183 = vector.broadcast %162 : vector<32x1xf32> to vector<32x8xf32>
    %184 = arith.addf %182, %183 : vector<32x8xf32>
    %185 = arith.addf %158, %153 : vector<32x1xf32>
    %cst_43 = arith.constant dense<0.000000e+00> : vector<32xf32>
    %186 = vector.multi_reduction <add>, %177, %cst_43 [1] : vector<32x8xf32> to vector<32xf32>
    %187 = vector.shape_cast %186 : vector<32xf32> to vector<32x1xf32>
    %cst_44 = arith.constant 8.000000e+00 : f32
    %188 = vector.broadcast %cst_44 : f32 to vector<32x1xf32>
    %189 = arith.divf %187, %188 : vector<32x1xf32>
    %190 = arith.subf %185, %189 : vector<32x1xf32>
    %191 = vector.broadcast %190 : vector<32x1xf32> to vector<32x8xf32>
    %192 = arith.addf %177, %191 : vector<32x8xf32>
    %193 = arith.addf %162, %154 : vector<32x1xf32>
    %cst_45 = arith.constant dense<0.000000e+00> : vector<32xf32>
    %194 = vector.multi_reduction <add>, %184, %cst_45 [1] : vector<32x8xf32> to vector<32xf32>
    %195 = vector.shape_cast %194 : vector<32xf32> to vector<32x1xf32>
    %cst_46 = arith.constant 8.000000e+00 : f32
    %196 = vector.broadcast %cst_46 : f32 to vector<32x1xf32>
    %197 = arith.divf %195, %196 : vector<32x1xf32>
    %198 = arith.subf %193, %197 : vector<32x1xf32>
    %199 = vector.broadcast %198 : vector<32x1xf32> to vector<32x8xf32>
    %200 = arith.addf %184, %199 : vector<32x8xf32>
    %201 = arith.fptosi %192 : vector<32x8xf32> to vector<32x8xi32>
    %c0_i32 = arith.constant 0 : i32
    %c15_i32 = arith.constant 15 : i32
    %202 = vector.broadcast %c0_i32 : i32 to vector<32x8xi32>
    %203 = arith.maxsi %202, %201 : vector<32x8xi32>
    %204 = vector.broadcast %c15_i32 : i32 to vector<32x8xi32>
    %205 = arith.minsi %204, %203 : vector<32x8xi32>
    %206 = arith.fptosi %200 : vector<32x8xf32> to vector<32x8xi32>
    %c0_i32_47 = arith.constant 0 : i32
    %c15_i32_48 = arith.constant 15 : i32
    %207 = vector.broadcast %c0_i32_47 : i32 to vector<32x8xi32>
    %208 = arith.maxsi %207, %206 : vector<32x8xi32>
    %209 = vector.broadcast %c15_i32_48 : i32 to vector<32x8xi32>
    %210 = arith.minsi %209, %208 : vector<32x8xi32>
    %c16_i32 = arith.constant 16 : i32
    %211 = vector.broadcast %c16_i32 : i32 to vector<32x8xi32>
    %212 = arith.muli %210, %211 : vector<32x8xi32>
    %213 = arith.addi %212, %205 : vector<32x8xi32>
    %cst_49 = arith.constant 1.000000e+00 : f32
    %214 = vector.broadcast %cst_49 : f32 to vector<32x1xf32>
    %215 = vector.extract_strided_slice %213 {offsets = [0, 0], sizes = [32, 1], strides = [1, 1]} : vector<32x8xi32> to vector<32x1xi32>
    %c0_50 = arith.constant 0 : index
    %c0_51 = arith.constant 0 : index
    %c0_52 = arith.constant 0 : index
    %216 = vector.load %arg1[%c0_50, %c0_51, %c0_52] : memref<1x8x256xf32, #tpu.memory_space<vmem>>, vector<1x1x256xf32>
    %217 = vector.shape_cast %216 : vector<1x1x256xf32> to vector<1x256xf32>
    %218 = vector.broadcast %2 : vector<1x256xi32> to vector<32x256xi32>
    %219 = vector.broadcast %215 : vector<32x1xi32> to vector<32x256xi32>
    %220 = arith.cmpi eq, %218, %219 : vector<32x256xi32>
    %cst_53 = arith.constant 0.000000e+00 : f32
    %221 = vector.shape_cast %217 : vector<1x256xf32> to vector<1x256xf32>
    %222 = vector.broadcast %221 : vector<1x256xf32> to vector<32x256xf32>
    %223 = vector.broadcast %cst_53 : f32 to vector<32x256xf32>
    %224 = arith.select %220, %222, %223 : vector<32x256xi1>, vector<32x256xf32>
    %cst_54 = arith.constant dense<0.000000e+00> : vector<32xf32>
    %225 = vector.multi_reduction <add>, %224, %cst_54 [1] : vector<32x256xf32> to vector<32xf32>
    %226 = vector.shape_cast %225 : vector<32xf32> to vector<32x1xf32>
    %227 = arith.mulf %214, %226 : vector<32x1xf32>
    %228 = vector.extract_strided_slice %213 {offsets = [0, 1], sizes = [32, 1], strides = [1, 1]} : vector<32x8xi32> to vector<32x1xi32>
    %c0_55 = arith.constant 0 : index
    %c1_56 = arith.constant 1 : index
    %c0_57 = arith.constant 0 : index
    %229 = vector.load %arg1[%c0_55, %c1_56, %c0_57] : memref<1x8x256xf32, #tpu.memory_space<vmem>>, vector<1x1x256xf32>
    %230 = vector.shape_cast %229 : vector<1x1x256xf32> to vector<1x256xf32>
    %231 = vector.broadcast %2 : vector<1x256xi32> to vector<32x256xi32>
    %232 = vector.broadcast %228 : vector<32x1xi32> to vector<32x256xi32>
    %233 = arith.cmpi eq, %231, %232 : vector<32x256xi32>
    %cst_58 = arith.constant 0.000000e+00 : f32
    %234 = vector.shape_cast %230 : vector<1x256xf32> to vector<1x256xf32>
    %235 = vector.broadcast %234 : vector<1x256xf32> to vector<32x256xf32>
    %236 = vector.broadcast %cst_58 : f32 to vector<32x256xf32>
    %237 = arith.select %233, %235, %236 : vector<32x256xi1>, vector<32x256xf32>
    %cst_59 = arith.constant dense<0.000000e+00> : vector<32xf32>
    %238 = vector.multi_reduction <add>, %237, %cst_59 [1] : vector<32x256xf32> to vector<32xf32>
    %239 = vector.shape_cast %238 : vector<32xf32> to vector<32x1xf32>
    %240 = arith.mulf %227, %239 : vector<32x1xf32>
    %241 = vector.extract_strided_slice %213 {offsets = [0, 2], sizes = [32, 1], strides = [1, 1]} : vector<32x8xi32> to vector<32x1xi32>
    %c0_60 = arith.constant 0 : index
    %c2_61 = arith.constant 2 : index
    %c0_62 = arith.constant 0 : index
    %242 = vector.load %arg1[%c0_60, %c2_61, %c0_62] : memref<1x8x256xf32, #tpu.memory_space<vmem>>, vector<1x1x256xf32>
    %243 = vector.shape_cast %242 : vector<1x1x256xf32> to vector<1x256xf32>
    %244 = vector.broadcast %2 : vector<1x256xi32> to vector<32x256xi32>
    %245 = vector.broadcast %241 : vector<32x1xi32> to vector<32x256xi32>
    %246 = arith.cmpi eq, %244, %245 : vector<32x256xi32>
    %cst_63 = arith.constant 0.000000e+00 : f32
    %247 = vector.shape_cast %243 : vector<1x256xf32> to vector<1x256xf32>
    %248 = vector.broadcast %247 : vector<1x256xf32> to vector<32x256xf32>
    %249 = vector.broadcast %cst_63 : f32 to vector<32x256xf32>
    %250 = arith.select %246, %248, %249 : vector<32x256xi1>, vector<32x256xf32>
    %cst_64 = arith.constant dense<0.000000e+00> : vector<32xf32>
    %251 = vector.multi_reduction <add>, %250, %cst_64 [1] : vector<32x256xf32> to vector<32xf32>
    %252 = vector.shape_cast %251 : vector<32xf32> to vector<32x1xf32>
    %253 = arith.mulf %240, %252 : vector<32x1xf32>
    %254 = vector.extract_strided_slice %213 {offsets = [0, 3], sizes = [32, 1], strides = [1, 1]} : vector<32x8xi32> to vector<32x1xi32>
    %c0_65 = arith.constant 0 : index
    %c3_66 = arith.constant 3 : index
    %c0_67 = arith.constant 0 : index
    %255 = vector.load %arg1[%c0_65, %c3_66, %c0_67] : memref<1x8x256xf32, #tpu.memory_space<vmem>>, vector<1x1x256xf32>
    %256 = vector.shape_cast %255 : vector<1x1x256xf32> to vector<1x256xf32>
    %257 = vector.broadcast %2 : vector<1x256xi32> to vector<32x256xi32>
    %258 = vector.broadcast %254 : vector<32x1xi32> to vector<32x256xi32>
    %259 = arith.cmpi eq, %257, %258 : vector<32x256xi32>
    %cst_68 = arith.constant 0.000000e+00 : f32
    %260 = vector.shape_cast %256 : vector<1x256xf32> to vector<1x256xf32>
    %261 = vector.broadcast %260 : vector<1x256xf32> to vector<32x256xf32>
    %262 = vector.broadcast %cst_68 : f32 to vector<32x256xf32>
    %263 = arith.select %259, %261, %262 : vector<32x256xi1>, vector<32x256xf32>
    %cst_69 = arith.constant dense<0.000000e+00> : vector<32xf32>
    %264 = vector.multi_reduction <add>, %263, %cst_69 [1] : vector<32x256xf32> to vector<32xf32>
    %265 = vector.shape_cast %264 : vector<32xf32> to vector<32x1xf32>
    %266 = arith.mulf %253, %265 : vector<32x1xf32>
    %267 = vector.extract_strided_slice %213 {offsets = [0, 4], sizes = [32, 1], strides = [1, 1]} : vector<32x8xi32> to vector<32x1xi32>
    %c0_70 = arith.constant 0 : index
    %c4_71 = arith.constant 4 : index
    %c0_72 = arith.constant 0 : index
    %268 = vector.load %arg1[%c0_70, %c4_71, %c0_72] : memref<1x8x256xf32, #tpu.memory_space<vmem>>, vector<1x1x256xf32>
    %269 = vector.shape_cast %268 : vector<1x1x256xf32> to vector<1x256xf32>
    %270 = vector.broadcast %2 : vector<1x256xi32> to vector<32x256xi32>
    %271 = vector.broadcast %267 : vector<32x1xi32> to vector<32x256xi32>
    %272 = arith.cmpi eq, %270, %271 : vector<32x256xi32>
    %cst_73 = arith.constant 0.000000e+00 : f32
    %273 = vector.shape_cast %269 : vector<1x256xf32> to vector<1x256xf32>
    %274 = vector.broadcast %273 : vector<1x256xf32> to vector<32x256xf32>
    %275 = vector.broadcast %cst_73 : f32 to vector<32x256xf32>
    %276 = arith.select %272, %274, %275 : vector<32x256xi1>, vector<32x256xf32>
    %cst_74 = arith.constant dense<0.000000e+00> : vector<32xf32>
    %277 = vector.multi_reduction <add>, %276, %cst_74 [1] : vector<32x256xf32> to vector<32xf32>
    %278 = vector.shape_cast %277 : vector<32xf32> to vector<32x1xf32>
    %279 = arith.mulf %266, %278 : vector<32x1xf32>
    %280 = vector.extract_strided_slice %213 {offsets = [0, 5], sizes = [32, 1], strides = [1, 1]} : vector<32x8xi32> to vector<32x1xi32>
    %c0_75 = arith.constant 0 : index
    %c5_76 = arith.constant 5 : index
    %c0_77 = arith.constant 0 : index
    %281 = vector.load %arg1[%c0_75, %c5_76, %c0_77] : memref<1x8x256xf32, #tpu.memory_space<vmem>>, vector<1x1x256xf32>
    %282 = vector.shape_cast %281 : vector<1x1x256xf32> to vector<1x256xf32>
    %283 = vector.broadcast %2 : vector<1x256xi32> to vector<32x256xi32>
    %284 = vector.broadcast %280 : vector<32x1xi32> to vector<32x256xi32>
    %285 = arith.cmpi eq, %283, %284 : vector<32x256xi32>
    %cst_78 = arith.constant 0.000000e+00 : f32
    %286 = vector.shape_cast %282 : vector<1x256xf32> to vector<1x256xf32>
    %287 = vector.broadcast %286 : vector<1x256xf32> to vector<32x256xf32>
    %288 = vector.broadcast %cst_78 : f32 to vector<32x256xf32>
    %289 = arith.select %285, %287, %288 : vector<32x256xi1>, vector<32x256xf32>
    %cst_79 = arith.constant dense<0.000000e+00> : vector<32xf32>
    %290 = vector.multi_reduction <add>, %289, %cst_79 [1] : vector<32x256xf32> to vector<32xf32>
    %291 = vector.shape_cast %290 : vector<32xf32> to vector<32x1xf32>
    %292 = arith.mulf %279, %291 : vector<32x1xf32>
    %293 = vector.extract_strided_slice %213 {offsets = [0, 6], sizes = [32, 1], strides = [1, 1]} : vector<32x8xi32> to vector<32x1xi32>
    %c0_80 = arith.constant 0 : index
    %c6_81 = arith.constant 6 : index
    %c0_82 = arith.constant 0 : index
    %294 = vector.load %arg1[%c0_80, %c6_81, %c0_82] : memref<1x8x256xf32, #tpu.memory_space<vmem>>, vector<1x1x256xf32>
    %295 = vector.shape_cast %294 : vector<1x1x256xf32> to vector<1x256xf32>
    %296 = vector.broadcast %2 : vector<1x256xi32> to vector<32x256xi32>
    %297 = vector.broadcast %293 : vector<32x1xi32> to vector<32x256xi32>
    %298 = arith.cmpi eq, %296, %297 : vector<32x256xi32>
    %cst_83 = arith.constant 0.000000e+00 : f32
    %299 = vector.shape_cast %295 : vector<1x256xf32> to vector<1x256xf32>
    %300 = vector.broadcast %299 : vector<1x256xf32> to vector<32x256xf32>
    %301 = vector.broadcast %cst_83 : f32 to vector<32x256xf32>
    %302 = arith.select %298, %300, %301 : vector<32x256xi1>, vector<32x256xf32>
    %cst_84 = arith.constant dense<0.000000e+00> : vector<32xf32>
    %303 = vector.multi_reduction <add>, %302, %cst_84 [1] : vector<32x256xf32> to vector<32xf32>
    %304 = vector.shape_cast %303 : vector<32xf32> to vector<32x1xf32>
    %305 = arith.mulf %292, %304 : vector<32x1xf32>
    %306 = vector.extract_strided_slice %213 {offsets = [0, 7], sizes = [32, 1], strides = [1, 1]} : vector<32x8xi32> to vector<32x1xi32>
    %c0_85 = arith.constant 0 : index
    %c7_86 = arith.constant 7 : index
    %c0_87 = arith.constant 0 : index
    %307 = vector.load %arg1[%c0_85, %c7_86, %c0_87] : memref<1x8x256xf32, #tpu.memory_space<vmem>>, vector<1x1x256xf32>
    %308 = vector.shape_cast %307 : vector<1x1x256xf32> to vector<1x256xf32>
    %309 = vector.broadcast %2 : vector<1x256xi32> to vector<32x256xi32>
    %310 = vector.broadcast %306 : vector<32x1xi32> to vector<32x256xi32>
    %311 = arith.cmpi eq, %309, %310 : vector<32x256xi32>
    %cst_88 = arith.constant 0.000000e+00 : f32
    %312 = vector.shape_cast %308 : vector<1x256xf32> to vector<1x256xf32>
    %313 = vector.broadcast %312 : vector<1x256xf32> to vector<32x256xf32>
    %314 = vector.broadcast %cst_88 : f32 to vector<32x256xf32>
    %315 = arith.select %311, %313, %314 : vector<32x256xi1>, vector<32x256xf32>
    %cst_89 = arith.constant dense<0.000000e+00> : vector<32xf32>
    %316 = vector.multi_reduction <add>, %315, %cst_89 [1] : vector<32x256xf32> to vector<32xf32>
    %317 = vector.shape_cast %316 : vector<32xf32> to vector<32x1xf32>
    %318 = arith.mulf %305, %317 : vector<32x1xf32>
    %cst_90 = arith.constant dense<0xFF800000> : vector<1xf32>
    %319 = vector.multi_reduction <maximumf>, %318, %cst_90 [0] : vector<32x1xf32> to vector<1xf32>
    %320 = vector.shape_cast %319 : vector<1xf32> to vector<1x1xf32>
    %321 = tpu.iota {dimensions = array<i32: 0>} : vector<32x1xi32>
    %322 = vector.broadcast %320 : vector<1x1xf32> to vector<32x1xf32>
    %323 = arith.cmpf oeq, %318, %322 : vector<32x1xf32>
    %c32_i32 = arith.constant 32 : i32
    %324 = vector.broadcast %c32_i32 : i32 to vector<32x1xi32>
    %325 = arith.select %323, %321, %324 : vector<32x1xi1>, vector<32x1xi32>
    %cst_91 = arith.constant dense<2147483647> : vector<1xi32>
    %326 = vector.multi_reduction <minsi>, %325, %cst_91 [0] : vector<32x1xi32> to vector<1xi32>
    %327 = vector.shape_cast %326 : vector<1xi32> to vector<1x1xi32>
    %328 = vector.broadcast %327 : vector<1x1xi32> to vector<32x1xi32>
    %329 = arith.cmpi eq, %321, %328 : vector<32x1xi32>
    %c0_i32_92 = arith.constant 0 : i32
    %330 = vector.shape_cast %329 : vector<32x1xi1> to vector<32x1xi1>
    %331 = vector.broadcast %330 : vector<32x1xi1> to vector<32x8xi1>
    %332 = vector.broadcast %c0_i32_92 : i32 to vector<32x8xi32>
    %333 = arith.select %331, %205, %332 : vector<32x8xi1>, vector<32x8xi32>
    %cst_93 = arith.constant dense<0> : vector<8xi32>
    %334 = vector.multi_reduction <add>, %333, %cst_93 [0] : vector<32x8xi32> to vector<8xi32>
    %335 = vector.shape_cast %334 : vector<8xi32> to vector<1x8xi32>
    %c0_i32_94 = arith.constant 0 : i32
    %336 = vector.shape_cast %329 : vector<32x1xi1> to vector<32x1xi1>
    %337 = vector.broadcast %336 : vector<32x1xi1> to vector<32x8xi1>
    %338 = vector.broadcast %c0_i32_94 : i32 to vector<32x8xi32>
    %339 = arith.select %337, %210, %338 : vector<32x8xi1>, vector<32x8xi32>
    %cst_95 = arith.constant dense<0> : vector<8xi32>
    %340 = vector.multi_reduction <add>, %339, %cst_95 [0] : vector<32x8xi32> to vector<8xi32>
    %341 = vector.shape_cast %340 : vector<8xi32> to vector<1x8xi32>
    %342 = tpu.concatenate %335, %341 in 0 : vector<1x8xi32>, vector<1x8xi32> -> vector<2x8xi32>
    %c0_i32_96 = arith.constant 0 : i32
    %343 = vector.broadcast %c0_i32_96 : i32 to vector<2x120xi32>
    %344 = tpu.concatenate %342, %343 in 1 : vector<2x8xi32>, vector<2x120xi32> -> vector<2x128xi32>
    %c0_97 = arith.constant 0 : index
    %c0_98 = arith.constant 0 : index
    %c0_99 = arith.constant 0 : index
    %345 = vector.load %arg5[%c0_97, %c0_98, %c0_99] : memref<1x2x128xi32, #tpu.memory_space<vmem>>, vector<1x2x128xi32>
    %346 = vector.shape_cast %345 : vector<1x2x128xi32> to vector<2x128xi32>
    %347 = vector.shape_cast %344 : vector<2x128xi32> to vector<1x2x128xi32>
    tpu.vector_store %arg5[%c0_97, %c0_98, %c0_99], %347 {strides = array<i32>} : memref<1x2x128xi32, #tpu.memory_space<vmem>>, vector<1x2x128xi32>,
    return
  }
  func.func @transform_0(%arg0: i32) -> (i32, i32, i32) {
    %c0_i32 = arith.constant 0 : i32
    %c0_i32_0 = arith.constant 0 : i32
    %c0_i32_1 = arith.constant 0 : i32
    return %arg0, %c0_i32, %c0_i32_0 : i32, i32, i32
  }
  func.func @transform_1(%arg0: i32) -> (i32, i32) {
    %c0_i32 = arith.constant 0 : i32
    %c0_i32_0 = arith.constant 0 : i32
    %c0_i32_1 = arith.constant 0 : i32
    return %c0_i32, %c0_i32_0 : i32, i32
  }
  func.func @transform_2(%arg0: i32) -> (i32, i32, i32) {
    %c0_i32 = arith.constant 0 : i32
    %c0_i32_0 = arith.constant 0 : i32
    %c0_i32_1 = arith.constant 0 : i32
    return %arg0, %c0_i32, %c0_i32_0 : i32, i32, i32
  }
  func.func @transform_3(%arg0: i32) -> (i32, i32, i32) {
    %c0_i32 = arith.constant 0 : i32
    %c0_i32_0 = arith.constant 0 : i32
    %c0_i32_1 = arith.constant 0 : i32
    return %arg0, %c0_i32, %c0_i32_0 : i32, i32, i32
  }
  func.func @transform_4(%arg0: i32) -> (i32, i32, i32) {
    %c0_i32 = arith.constant 0 : i32
    %c0_i32_0 = arith.constant 0 : i32
    %c0_i32_1 = arith.constant 0 : i32
    return %arg0, %c0_i32, %c0_i32_0 : i32, i32, i32
  }
}

</mosaic_0001>

<llo_original>
// kernel: tpu_custom_call.1
$region0: #{tpu_custom_call.1}
  #allocation0 [shape = 'u32[]', space=smem, size = 0x4, offset = 0x4, fixed_abs, tag = 'smem constant byte address 0x4 - core index']
  #allocation1 [shape = 'u32[72,128]{1,0:T(1,128)}', space=vmem, size = 0x9000, scoped, tag = 'internal scratch']
  %s0 = inlined_call_operand.vmem [shape: f32[2,8,256], index: 0, kind: input, shape index: {}]
  %s1 = inlined_call_operand.vmem [shape: f32[8,8], index: 1, kind: input, shape index: {}]
  %s2 = inlined_call_operand.vmem [shape: f32[2,32,4], index: 2, kind: input, shape index: {}]
  %s3 = inlined_call_operand.vmem [shape: f32[2,32,5], index: 3, kind: input, shape index: {}]
  %s4 = inlined_call_operand.hbm [shape: s32[2,2,128], index: 4, kind: output, shape index: {}]
  %s5 = sld [smem:[#allocation0]]
  $region49: #{tpu_custom_call.1} parent=0
    _
  %s7 = ssub.s32 1, %s5
  %s8 = scalar_select 0, %s7, %s5
  $region1: #{tpu_custom_call.1} parent=0
    #allocation2 [shape = 'u8[2048]{0}', space=vmem, size = 0x800, scoped, tag = 'output window, operand 0']
    #allocation3 [shape = 's32[2]{0}', space=sflag, size = 0x8, scoped, tag = 'scoped memory for tpu_custom_call.1']
    %9 = vsyncpa [#allocation3], 0
    %s10 = scalar_lea.sflag [#allocation3], 1
    %11 = vsyncpa %s10, 0
    loop: start=0, step=1, limit=4
    $region2: #{tpu_custom_call.1} parent=1 // loop_pre_header
      _
    $region3: #{tpu_custom_call.1} parent=1 // loop_header
      %s13 = sphi 0, %s17
      %p14 = scmp.ge.s32.totalorder %s13, 4
      %s23 = sphi 0, %s25
      %s26 = sphi 0, %s23
      %s27 = sphi 0, %s26
      %s43 = sphi 0, %s27
      %s47 = sphi 0, %s47
      %s49 = sphi 0, %s47
      %s50 = sphi 0, %s49
      %s64 = sphi 0, %s50
      %s70 = sphi 0, %s72
      %s73 = sphi 0, %s70
      %s74 = sphi 0, %s73
      %s90 = sphi 0, %s74
      %s96 = sphi 0, %s98
      %s99 = sphi 0, %s96
      %s100 = sphi 0, %s99
      %s116 = sphi 0, %s100
      %s122 = sphi 0, %s124
      %s125 = sphi 0, %s122
      %s126 = sphi 0, %s125
      %s142 = sphi 0, %s126
    $region4: #{tpu_custom_call.1} parent=1 // loop_header_branch
      %16 = sbr.rel (%p14) target = $region8
    $region5: #{tpu_custom_call.1} parent=1 // loop_body
      %s18 = ssub.s32 %s13, 1
      %s19 = ssub.s32 %s13, 2
      %s20 = sadd.s32 %s13, 1
      %s21 = ssub.s32 %s13, %s20
      %p22 = scmp.eq.s32.totalorder %s21, 0
      %s24 = sadd.s32 %s23, 1
      %s25 = scalar_select %p22, %s23, %s24
      %p28 = pneg %p22
      %p29 = scmp.eq.s32.totalorder %s13, 1
      %p30 = por %p28, %p29
      %p31 = scmp.ne.s32.totalorder %s23, %s26
      %p32 = scmp.eq.s32.totalorder %s13, 0
      %p33 = por %p31, %p32
      %p34 = scmp.ne.s32.totalorder %s23, %s26
      %p35 = scmp.eq.s32.totalorder %s18, 1
      %p36 = por %p34, %p35
      %p37 = scmp.ne.s32.totalorder %s26, %s27
      %p38 = scmp.eq.s32.totalorder %s18, 0
      %p39 = por %p37, %p38
      %p40 = scmp.ne.s32.totalorder %s26, %s27
      %p41 = scmp.eq.s32.totalorder %s19, 1
      %p42 = por %p40, %p41
      %p44 = scmp.ne.s32.totalorder %s27, %s43
      %p45 = scmp.eq.s32.totalorder %s19, 0
      %p46 = por %p44, %p45
      %s48 = sadd.s32 %s47, 1
      %p51 = scmp.eq.s32.totalorder %s13, 1
      %p52 = scmp.ne.s32.totalorder %s47, %s49
      %p53 = scmp.eq.s32.totalorder %s13, 0
      %p54 = por %p52, %p53
      %p55 = scmp.ne.s32.totalorder %s47, %s49
      %p56 = scmp.eq.s32.totalorder %s18, 1
      %p57 = por %p55, %p56
      %p58 = scmp.ne.s32.totalorder %s49, %s50
      %p59 = scmp.eq.s32.totalorder %s18, 0
      %p60 = por %p58, %p59
      %p61 = scmp.ne.s32.totalorder %s49, %s50
      %p62 = scmp.eq.s32.totalorder %s19, 1
      %p63 = por %p61, %p62
      %p65 = scmp.ne.s32.totalorder %s50, %s64
      %p66 = scmp.eq.s32.totalorder %s19, 0
      %p67 = por %p65, %p66
      %s68 = ssub.s32 %s13, %s20
      %p69 = scmp.eq.s32.totalorder %s68, 0
      %s71 = sadd.s32 %s70, 1
      %s72 = scalar_select %p69, %s70, %s71
      %p75 = pneg %p69
      %p76 = scmp.eq.s32.totalorder %s13, 1
      %p77 = por %p75, %p76
      %p78 = scmp.ne.s32.totalorder %s70, %s73
      %p79 = scmp.eq.s32.totalorder %s13, 0
      %p80 = por %p78, %p79
      %p81 = scmp.ne.s32.totalorder %s70, %s73
      %p82 = scmp.eq.s32.totalorder %s18, 1
      %p83 = por %p81, %p82
      %p84 = scmp.ne.s32.totalorder %s73, %s74
      %p85 = scmp.eq.s32.totalorder %s18, 0
      %p86 = por %p84, %p85
      %p87 = scmp.ne.s32.totalorder %s73, %s74
      %p88 = scmp.eq.s32.totalorder %s19, 1
      %p89 = por %p87, %p88
      %p91 = scmp.ne.s32.totalorder %s74, %s90
      %p92 = scmp.eq.s32.totalorder %s19, 0
      %p93 = por %p91, %p92
      %s94 = ssub.s32 %s13, %s20
      %p95 = scmp.eq.s32.totalorder %s94, 0
      %s97 = sadd.s32 %s96, 1
      %s98 = scalar_select %p95, %s96, %s97
      %p101 = pneg %p95
      %p102 = scmp.eq.s32.totalorder %s13, 1
      %p103 = por %p101, %p102
      %p104 = scmp.ne.s32.totalorder %s96, %s99
      %p105 = scmp.eq.s32.totalorder %s13, 0
      %p106 = por %p104, %p105
      %p107 = scmp.ne.s32.totalorder %s96, %s99
      %p108 = scmp.eq.s32.totalorder %s18, 1
      %p109 = por %p107, %p108
      %p110 = scmp.ne.s32.totalorder %s99, %s100
      %p111 = scmp.eq.s32.totalorder %s18, 0
      %p112 = por %p110, %p111
      %p113 = scmp.ne.s32.totalorder %s99, %s100
      %p114 = scmp.eq.s32.totalorder %s19, 1
      %p115 = por %p113, %p114
      %p117 = scmp.ne.s32.totalorder %s100, %s116
      %p118 = scmp.eq.s32.totalorder %s19, 0
      %p119 = por %p117, %p118
      %s120 = ssub.s32 %s13, %s20
      %p121 = scmp.eq.s32.totalorder %s120, 0
      %s123 = sadd.s32 %s122, 1
      %s124 = scalar_select %p121, %s122, %s123
      %p127 = pneg %p121
      %p128 = scmp.eq.s32.totalorder %s13, 1
      %p129 = por %p127, %p128
      %p130 = scmp.ne.s32.totalorder %s122, %s125
      %p131 = scmp.eq.s32.totalorder %s13, 0
      %p132 = por %p130, %p131
      %p133 = scmp.ne.s32.totalorder %s122, %s125
      %p134 = scmp.eq.s32.totalorder %s18, 1
      %p135 = por %p133, %p134
      %p136 = scmp.ne.s32.totalorder %s125, %s126
      %p137 = scmp.eq.s32.totalorder %s18, 0
      %p138 = por %p136, %p137
      %p139 = scmp.ne.s32.totalorder %s125, %s126
      %p140 = scmp.eq.s32.totalorder %s19, 1
      %p141 = por %p139, %p140
      %p143 = scmp.ne.s32.totalorder %s126, %s142
      %p144 = scmp.eq.s32.totalorder %s19, 0
      %p145 = por %p143, %p144
      %p146 = scmp.le.s32.totalorder 1, %s13
      %p147 = scmp.lt.s32.totalorder %s13, 3
      %p148 = pnand %p146, %p147
      %p149 = pneg %p148
      // Predicated region
      $region9: #{tpu_custom_call.1} parent=5 // pred_check
        _
      $region10: #{tpu_custom_call.1} parent=5 // pred_check_branch
        %151 = sbr.rel (%p148) target = $region12
      $region11: #{tpu_custom_call.1} parent=5 // pred_region
        %s152 = ssub.s32 %s13, 1
        // Predicated region
        $region13: #{tpu_custom_call.1} parent=11 // pred_check
          %p153 = pneg %p60
        $region14: #{tpu_custom_call.1} parent=11 // pred_check_branch
          %155 = sbr.rel (%p153) target = $region16
        $region15: #{tpu_custom_call.1} parent=11 // pred_region
          _
        $region16: #{tpu_custom_call.1} parent=11 // pred_fallthru
          _
      $region12: #{tpu_custom_call.1} parent=5 // pred_fallthru
        _
      %p156 = scmp.lt.s32.totalorder %s13, 2
      // Predicated region
      $region17: #{tpu_custom_call.1} parent=5 // pred_check
        %p157 = pneg %p156
      $region18: #{tpu_custom_call.1} parent=5 // pred_check_branch
        %159 = sbr.rel (%p157) target = $region20
      $region19: #{tpu_custom_call.1} parent=5 // pred_region
        // Predicated region
        $region21: #{tpu_custom_call.1} parent=19 // pred_check
          %p160 = pneg %p33
        $region22: #{tpu_custom_call.1} parent=19 // pred_check_branch
          %162 = sbr.rel (%p160) target = $region24
        $region23: #{tpu_custom_call.1} parent=19 // pred_region
          %p163 = scmp.lt.s32.totalorder %s13, 1
          %s164 = scalar_select %p163, %s13, 1
          %s165 = smul.addr %s164, 2
          %s166 = smul.addr %s165, 8
          %s167 = scalar_lea.vmem %s0, %s166
        $region24: #{tpu_custom_call.1} parent=19 // pred_fallthru
          _
        // Predicated region
        $region25: #{tpu_custom_call.1} parent=19 // pred_check
          %p168 = pneg %p80
        $region26: #{tpu_custom_call.1} parent=19 // pred_check_branch
          %170 = sbr.rel (%p168) target = $region28
        $region27: #{tpu_custom_call.1} parent=19 // pred_region
          %p171 = scmp.lt.s32.totalorder %s13, 1
          %s172 = scalar_select %p171, %s13, 1
          %s173 = smul.addr %s172, 4
          %s174 = smul.addr %s173, 8
          %s175 = scalar_lea.vmem %s2, %s174
        $region28: #{tpu_custom_call.1} parent=19 // pred_fallthru
          _
        // Predicated region
        $region29: #{tpu_custom_call.1} parent=19 // pred_check
          %p176 = pneg %p106
        $region30: #{tpu_custom_call.1} parent=19 // pred_check_branch
          %178 = sbr.rel (%p176) target = $region32
        $region31: #{tpu_custom_call.1} parent=19 // pred_region
          %p179 = scmp.lt.s32.totalorder %s13, 1
          %s180 = scalar_select %p179, %s13, 1
          %s181 = smul.addr %s180, 4
          %s182 = smul.addr %s181, 8
          %s183 = scalar_lea.vmem %s3, %s182
        $region32: #{tpu_custom_call.1} parent=19 // pred_fallthru
          _
      $region20: #{tpu_custom_call.1} parent=5 // pred_fallthru
        _
      %p184 = scmp.le.s32.totalorder 1, %s13
      %p185 = scmp.lt.s32.totalorder %s13, 3
      %p186 = pnand %p184, %p185
      %p187 = pneg %p186
      // Predicated region
      $region33: #{tpu_custom_call.1} parent=5 // pred_check
        _
      $region34: #{tpu_custom_call.1} parent=5 // pred_check_branch
        %189 = sbr.rel (%p186) target = $region36
      $region35: #{tpu_custom_call.1} parent=5 // pred_region
        %s190 = ssub.s32 %s13, 1
        %p191 = scmp.lt.s32.totalorder %s18, 1
        %s192 = scalar_select %p191, %s18, 1
        %s193 = smul.addr %s192, 2
        %s194 = smul.addr %s193, 8
        %s195 = scalar_lea.vmem %s0, %s194
        %p196 = pneg %p39
        %p197 = pneg %p36
        %p198 = pneg %p60
        %p199 = pneg %p57
        %p200 = scmp.lt.s32.totalorder %s18, 1
        %s201 = scalar_select %p200, %s18, 1
        %s202 = smul.addr %s201, 4
        %s203 = smul.addr %s202, 8
        %s204 = scalar_lea.vmem %s2, %s203
        %p205 = pneg %p86
        %p206 = pneg %p83
        %p207 = scmp.lt.s32.totalorder %s18, 1
        %s208 = scalar_select %p207, %s18, 1
        %s209 = smul.addr %s208, 4
        %s210 = smul.addr %s209, 8
        %s211 = scalar_lea.vmem %s3, %s210
        %p212 = pneg %p112
        %p213 = pneg %p109
        %p214 = pneg %p138
        %p215 = pneg %p135
        %s216 = sand.u32 %s125, 1
        %s217 = scalar_lea.sflag [#allocation3], %s216
        %s218 = sand.u32 %s125, 1
        %s219 = smul.addr %s218, 2
        %s220 = scalar_lea.vmem [#allocation2], %s219
        %p221 = scmp.lt.s32.totalorder %s18, 1
        %s222 = scalar_select %p221, %s18, 1
        %s223 = smul.addr %s222, 2
        %s224 = smul.addr %s223, 8
        %s225 = scalar_lea.vmem %s0, %s224
        %p226 = scmp.lt.s32.totalorder %s18, 1
        %s227 = scalar_select %p226, %s18, 1
        %s228 = smul.addr %s227, 4
        %s229 = smul.addr %s228, 8
        %s230 = scalar_lea.vmem %s2, %s229
        %p231 = scmp.lt.s32.totalorder %s18, 1
        %s232 = scalar_select %p231, %s18, 1
        %s233 = smul.addr %s232, 4
        %s234 = smul.addr %s233, 8
        %s235 = scalar_lea.vmem %s3, %s234
        %v236 = vld [vmem:[%s225] sm:$0xff]
        %v237 = vld [vmem:[%s225 + $0x8] sm:$0xff]
        %v238 = vlaneseq
        %v239 = vand.u32 %v238, 127
        %v240 = vadd.s32 %v239, 128
        %v241 = vmax.f32 %v236, %v237
        %242 = vmax.xlane.f32.xlu0 %v241
        %v243 = vpop.xlane.xlu0 %242
        %vm244 = vcmp.eq.f32.partialorder %v236, %v243
        %vm245 = vcmp.eq.f32.partialorder %v237, %v243
        %v246 = vsel %vm244, %v239, 256
        %v247 = vsel %vm245, %v240, 256
        %vm248 = vcmp.lt.s32.totalorder %v246, %v247
        %v249 = vsel %vm248, %v246, %v247
        %v250 = vand.u32 %v249, 65535
        %v251 = vshra.s32 %v249, 16
        %v252 = vcvt.s32.f32 %v250
        %v253 = vcvt.s32.f32 %v251
        %254 = vmin.xlane.f32.xlu0 %v253
        %v255 = vpop.xlane.xlu0 %254
        %vm256 = vcmp.eq.f32.partialorder %v253, %v255
        %v257 = vsel %vm256, %v252, inf
        %258 = vmin.xlane.f32.xlu0 %v257
        %v259 = vpop.xlane.xlu0 %258
        %v260 = vcvt.f32.s32 %v259
        %v261 = vcvt.f32.s32 %v255
        %v262 = vshll.u32 %v261, 16
        %v263 = vadd.s32 %v262, %v260
        %vm264 = vcmp.lt.s32.totalorder %v263, 255
        %v265 = vsel %vm264, %v263, 255
        %v266 = vcvt.s32.f32 %v265
        %v267 = vrcp.pop 16.0
        %v268 = vmul.f32 16.0, %v267
        %v269 = vsub.f32 1.0, %v268
        %v270 = vmul.f32 %v267, %v269
        %v271 = vadd.f32 %v267, %v270
        %vm272 = vweird.f32 %v267
        %v273 = vsel %vm272, %v267, %v271
        %v274 = vmul.f32 %v266, %v273
        %v275 = vfloor.f32 %v274
        %v276 = vmul.f32 %v275, 16.0
        %v277 = vsub.f32 %v266, %v276
        %v278 = vrot.slane %v277, 4
        %v279 = vadd.f32 %v277, %v278
        %v280 = vrot.slane %v279, 2
        %v281 = vadd.f32 %v279, %v280
        %v282 = vrot.slane %v281, 1
        %v283 = vadd.f32 %v281, %v282
        %v284 = vrcp.pop 8.0
        %v285 = vmul.f32 8.0, %v284
        %v286 = vsub.f32 1.0, %v285
        %v287 = vmul.f32 %v284, %v286
        %v288 = vadd.f32 %v284, %v287
        %vm289 = vweird.f32 %v284
        %v290 = vsel %vm289, %v284, %v288
        %v291 = vmul.f32 %v283, %v290
        %v292 = vrot.slane %v275, 4
        %v293 = vadd.f32 %v275, %v292
        %v294 = vrot.slane %v293, 2
        %v295 = vadd.f32 %v293, %v294
        %v296 = vrot.slane %v295, 1
        %v297 = vadd.f32 %v295, %v296
        %v298 = vmul.f32 %v297, %v290
        %v299 = vsub.f32 %v277, %v291
        %v300 = vsub.f32 %v275, %v298
        %v301 = vmul.f32 %v299, %v299
        %v302 = vrot.slane %v301, 4
        %v303 = vadd.f32 %v301, %v302
        %v304 = vrot.slane %v303, 2
        %v305 = vadd.f32 %v303, %v304
        %v306 = vrot.slane %v305, 1
        %v307 = vadd.f32 %v305, %v306
        %v308 = vmul.f32 %v299, %v300
        %v309 = vrot.slane %v308, 4
        %v310 = vadd.f32 %v308, %v309
        %v311 = vrot.slane %v310, 2
        %v312 = vadd.f32 %v310, %v311
        %v313 = vrot.slane %v312, 1
        %v314 = vadd.f32 %v312, %v313
        %v315 = vmul.f32 %v300, %v300
        %v316 = vrot.slane %v315, 4
        %v317 = vadd.f32 %v315, %v316
        %v318 = vrot.slane %v317, 2
        %v319 = vadd.f32 %v317, %v318
        %v320 = vrot.slane %v319, 1
        %v321 = vadd.f32 %v319, %v320
        %v322 = vadd.f32 %v307, %v321
        %v323 = vsub.f32 %v307, %v321
        %v324 = vmul.f32 %v323, %v323
        %v325 = vmul.f32 %v314, 4.0
        %v326 = vmul.f32 %v325, %v314
        %v327 = vadd.f32 %v324, %v326
        %v328 = vrsqrt.pop %v327
        %v329 = vmul.f32 %v328, %v327
        %v330 = vmul.f32 %v329, %v328
        %v331 = vmul.f32 0.5, %v330
        %v332 = vsub.f32 1.5, %v331
        %v333 = vmul.f32 %v328, %v332
        %v334 = vmul.f32 %v327, %v333
        %vm335 = vcmp.eq.f32.partialorder %v327, inf
        %v336 = vsel %vm335, %v327, %v334
        %vm337 = vcmp.eq.f32.partialorder %v327, 0.0
        %v338 = vand.u32 %v327, 2147483648
        %v339 = vsel %vm337, %v338, %v336
        %v340 = vsub.f32 %v322, %v339
        %v341 = vmul.f32 %v340, 0.5
        %v342 = vsub.f32 %v341, %v307
        %v343 = vmul.f32 %v342, %v342
        %v344 = vmul.f32 %v314, %v314
        %v345 = vadd.f32 %v343, %v344
        %v346 = vrsqrt.pop %v345
        %v347 = vmul.f32 %v346, %v345
        %v348 = vmul.f32 %v347, %v346
        %v349 = vmul.f32 0.5, %v348
        %v350 = vsub.f32 1.5, %v349
        %v351 = vmul.f32 %v346, %v350
        %v352 = vmul.f32 %v345, %v351
        %vm353 = vcmp.eq.f32.partialorder %v345, inf
        %v354 = vsel %vm353, %v345, %v352
        %vm355 = vcmp.eq.f32.partialorder %v345, 0.0
        %v356 = vand.u32 %v345, 2147483648
        %v357 = vsel %vm355, %v356, %v354
        %v358 = vmax.f32 %v357, 1e-30
        %v359 = vrcp.pop %v358
        %v360 = vmul.f32 %v358, %v359
        %v361 = vsub.f32 1.0, %v360
        %v362 = vmul.f32 %v359, %v361
        %v363 = vadd.f32 %v359, %v362
        %vm364 = vweird.f32 %v358
        %vm365 = vweird.f32 %v359
        %vm366 = vmor %vm364, %vm365
        %v367 = vsel %vm366, %v359, %v363
        %v368 = vand.u32 2147483647, %v358
        %vm369 = vcmp.eq.f32.partialorder %v368, 8.507059e+37
        %v370 = vand.u32 %v358, 2147483648
        %v371 = vor.u32 1.1754944e-38, %v370
        %v372 = vsel %vm369, %v371, %v367
        %v373 = vmul.f32 1.0, %v372
        %vm374 = vcmp.gt.f32.partialorder %v357, 0.0
        %vm375 = vcmp.ge.f32.partialorder %v314, 0.0
        %v376 = vsel %vm375, 1.0, -1.0
        %v377 = vand.u32 2147483647, %v314
        %v378 = vmul.f32 %v377, %v373
        %v379 = vsel %vm374, %v378, 1.0
        %v380 = vsub.f32 0.0, %v342
        %v381 = vmul.f32 %v380, %v376
        %v382 = vmul.f32 %v381, %v373
        %v383 = vsel %vm374, %v382, 0.0
        %v384 = vld [vmem:[%s230] sm:$0xff]
        %v385 = vld [vmem:[%s230 + $0x8] sm:$0xff]
        %v386 = vld [vmem:[%s230 + $0x10] sm:$0xff]
        %v387 = vld [vmem:[%s230 + $0x18] sm:$0xff]
        %vm388 = vcmask 31744
        %v389 = vsel %vm388, %v384, 0.0
        %390 = vadd.xlane.f32.xlu0 %v389
        %v391 = vpop.xlane.xlu0 %390
        %v392 = vsel %vm388, %v385, 0.0
        %393 = vadd.xlane.f32.xlu0 %v392
        %v394 = vpop.xlane.xlu0 %393
        %v395 = vsel %vm388, %v386, 0.0
        %396 = vadd.xlane.f32.xlu0 %v395
        %v397 = vpop.xlane.xlu0 %396
        %v398 = vsel %vm388, %v387, 0.0
        %399 = vadd.xlane.f32.xlu0 %v398
        %v400 = vpop.xlane.xlu0 %399
        %v401 = vld [vmem:[%s1] sm:$0x1]
        %403 = vset.pattern.permute.xlu0 0
        %404 = vperm.xlu0 %403, %v384
        %v405 = vpop.permute.xlu0 %404
        %408 = vset.pattern.permute.xlu0 0
        %409 = vperm.xlu0 %408, %v385
        %v410 = vpop.permute.xlu0 %409
        %413 = vset.pattern.permute.xlu0 0
        %414 = vperm.xlu0 %413, %v386
        %v415 = vpop.permute.xlu0 %414
        %418 = vset.pattern.permute.xlu0 0
        %419 = vperm.xlu0 %418, %v387
        %v420 = vpop.permute.xlu0 %419
        %v422 = vperm.slane %v401, 0
        %v423 = vmul.f32 %v405, %v422
        %v424 = vmul.f32 %v410, %v422
        %v425 = vmul.f32 %v415, %v422
        %v426 = vmul.f32 %v420, %v422
        %v427 = vld [vmem:[%s1 + $0x4] sm:$0x1]
        %v428 = vperm.slane %v427, 0
        %v429 = vmul.f32 %v405, %v428
        %v430 = vmul.f32 %v410, %v428
        %v431 = vmul.f32 %v415, %v428
        %v432 = vmul.f32 %v420, %v428
        %v433 = vld [vmem:[%s1 + $0x1] sm:$0x1]
        %434 = vset.pattern.permute.xlu0 1
        %435 = vperm.xlu0 %434, %v384
        %v436 = vpop.permute.xlu0 %435
        %438 = vset.pattern.permute.xlu0 1
        %439 = vperm.xlu0 %438, %v385
        %v440 = vpop.permute.xlu0 %439
        %442 = vset.pattern.permute.xlu0 1
        %443 = vperm.xlu0 %442, %v386
        %v444 = vpop.permute.xlu0 %443
        %446 = vset.pattern.permute.xlu0 1
        %447 = vperm.xlu0 %446, %v387
        %v448 = vpop.permute.xlu0 %447
        %v450 = vperm.slane %v433, 0
        %v451 = vmul.f32 %v436, %v450
        %v452 = vmul.f32 %v440, %v450
        %v453 = vmul.f32 %v444, %v450
        %v454 = vmul.f32 %v448, %v450
        %v455 = vadd.f32 %v423, %v451
        %v456 = vadd.f32 %v424, %v452
        %v457 = vadd.f32 %v425, %v453
        %v458 = vadd.f32 %v426, %v454
        %v459 = vld [vmem:[%s1 + $0x5] sm:$0x1]
        %v460 = vperm.slane %v459, 0
        %v461 = vmul.f32 %v436, %v460
        %v462 = vmul.f32 %v440, %v460
        %v463 = vmul.f32 %v444, %v460
        %v464 = vmul.f32 %v448, %v460
        %v465 = vadd.f32 %v429, %v461
        %v466 = vadd.f32 %v430, %v462
        %v467 = vadd.f32 %v431, %v463
        %v468 = vadd.f32 %v432, %v464
        %v469 = vld [vmem:[%s1 + $0x2] sm:$0x1]
        %470 = vset.pattern.permute.xlu0 2
        %471 = vperm.xlu0 %470, %v384
        %v472 = vpop.permute.xlu0 %471
        %474 = vset.pattern.permute.xlu0 2
        %475 = vperm.xlu0 %474, %v385
        %v476 = vpop.permute.xlu0 %475
        %478 = vset.pattern.permute.xlu0 2
        %479 = vperm.xlu0 %478, %v386
        %v480 = vpop.permute.xlu0 %479
        %482 = vset.pattern.permute.xlu0 2
        %483 = vperm.xlu0 %482, %v387
        %v484 = vpop.permute.xlu0 %483
        %v486 = vperm.slane %v469, 0
        %v487 = vmul.f32 %v472, %v486
        %v488 = vmul.f32 %v476, %v486
        %v489 = vmul.f32 %v480, %v486
        %v490 = vmul.f32 %v484, %v486
        %v491 = vadd.f32 %v455, %v487
        %v492 = vadd.f32 %v456, %v488
        %v493 = vadd.f32 %v457, %v489
        %v494 = vadd.f32 %v458, %v490
        %v495 = vld [vmem:[%s1 + $0x6] sm:$0x1]
        %v496 = vperm.slane %v495, 0
        %v497 = vmul.f32 %v472, %v496
        %v498 = vmul.f32 %v476, %v496
        %v499 = vmul.f32 %v480, %v496
        %v500 = vmul.f32 %v484, %v496
        %v501 = vadd.f32 %v465, %v497
        %v502 = vadd.f32 %v466, %v498
        %v503 = vadd.f32 %v467, %v499
        %v504 = vadd.f32 %v468, %v500
        %v505 = vld [vmem:[%s1 + $0x3] sm:$0x1]
        %506 = vset.pattern.permute.xlu0 3
        %507 = vperm.xlu0 %506, %v384
        %v508 = vpop.permute.xlu0 %507
        %510 = vset.pattern.permute.xlu0 3
        %511 = vperm.xlu0 %510, %v385
        %v512 = vpop.permute.xlu0 %511
        %514 = vset.pattern.permute.xlu0 3
        %515 = vperm.xlu0 %514, %v386
        %v516 = vpop.permute.xlu0 %515
        %518 = vset.pattern.permute.xlu0 3
        %519 = vperm.xlu0 %518, %v387
        %v520 = vpop.permute.xlu0 %519
        %v522 = vperm.slane %v505, 0
        %v523 = vmul.f32 %v508, %v522
        %v524 = vmul.f32 %v512, %v522
        %v525 = vmul.f32 %v516, %v522
        %v526 = vmul.f32 %v520, %v522
        %v527 = vadd.f32 %v491, %v523
        %v528 = vadd.f32 %v492, %v524
        %v529 = vadd.f32 %v493, %v525
        %v530 = vadd.f32 %v494, %v526
        %v531 = vld [vmem:[%s1 + $0x7] sm:$0x1]
        %v532 = vperm.slane %v531, 0
        %v533 = vmul.f32 %v508, %v532
        %v534 = vmul.f32 %v512, %v532
        %v535 = vmul.f32 %v516, %v532
        %v536 = vmul.f32 %v520, %v532
        %v537 = vadd.f32 %v501, %v533
        %v538 = vadd.f32 %v502, %v534
        %v539 = vadd.f32 %v503, %v535
        %v540 = vadd.f32 %v504, %v536
        %v541 = vmul.f32 %v379, %v527
        %v542 = vmul.f32 %v379, %v528
        %v543 = vmul.f32 %v379, %v529
        %v544 = vmul.f32 %v379, %v530
        %v545 = vmul.f32 %v383, %v537
        %v546 = vmul.f32 %v383, %v538
        %v547 = vmul.f32 %v383, %v539
        %v548 = vmul.f32 %v383, %v540
        %v549 = vsub.f32 %v541, %v545
        %v550 = vsub.f32 %v542, %v546
        %v551 = vsub.f32 %v543, %v547
        %v552 = vsub.f32 %v544, %v548
        %v553 = vmul.f32 %v291, %v391
        %v554 = vmul.f32 %v291, %v394
        %v555 = vmul.f32 %v291, %v397
        %v556 = vmul.f32 %v291, %v400
        %v557 = vadd.f32 %v549, %v553
        %v558 = vadd.f32 %v550, %v554
        %v559 = vadd.f32 %v551, %v555
        %v560 = vadd.f32 %v552, %v556
        %v561 = vmul.f32 %v383, %v527
        %v562 = vmul.f32 %v383, %v528
        %v563 = vmul.f32 %v383, %v529
        %v564 = vmul.f32 %v383, %v530
        %v565 = vmul.f32 %v379, %v537
        %v566 = vmul.f32 %v379, %v538
        %v567 = vmul.f32 %v379, %v539
        %v568 = vmul.f32 %v379, %v540
        %v569 = vadd.f32 %v561, %v565
        %v570 = vadd.f32 %v562, %v566
        %v571 = vadd.f32 %v563, %v567
        %v572 = vadd.f32 %v564, %v568
        %v573 = vmul.f32 %v298, %v391
        %v574 = vmul.f32 %v298, %v394
        %v575 = vmul.f32 %v298, %v397
        %v576 = vmul.f32 %v298, %v400
        %v577 = vadd.f32 %v569, %v573
        %v578 = vadd.f32 %v570, %v574
        %v579 = vadd.f32 %v571, %v575
        %v580 = vadd.f32 %v572, %v576
        %v581 = vld [vmem:[%s235] sm:$0xff]
        %v582 = vld [vmem:[%s235 + $0x8] sm:$0xff]
        %v583 = vld [vmem:[%s235 + $0x10] sm:$0xff]
        %v584 = vld [vmem:[%s235 + $0x18] sm:$0xff]
        %vm585 = vcmask 64512
        %v586 = vsel %vm585, %v557, 0.0
        %587 = vadd.xlane.f32.xlu0 %v586
        %v588 = vpop.xlane.xlu0 %587
        %v589 = vsel %vm585, %v558, 0.0
        %590 = vadd.xlane.f32.xlu0 %v589
        %v591 = vpop.xlane.xlu0 %590
        %v592 = vsel %vm585, %v559, 0.0
        %593 = vadd.xlane.f32.xlu0 %v592
        %v594 = vpop.xlane.xlu0 %593
        %v595 = vsel %vm585, %v560, 0.0
        %596 = vadd.xlane.f32.xlu0 %v595
        %v597 = vpop.xlane.xlu0 %596
        %v598 = vmul.f32 %v588, %v290
        %v599 = vmul.f32 %v591, %v290
        %v600 = vmul.f32 %v594, %v290
        %v601 = vmul.f32 %v597, %v290
        %v602 = vsel %vm585, %v577, 0.0
        %603 = vadd.xlane.f32.xlu0 %v602
        %v604 = vpop.xlane.xlu0 %603
        %v605 = vsel %vm585, %v578, 0.0
        %606 = vadd.xlane.f32.xlu0 %v605
        %v607 = vpop.xlane.xlu0 %606
        %v608 = vsel %vm585, %v579, 0.0
        %609 = vadd.xlane.f32.xlu0 %v608
        %v610 = vpop.xlane.xlu0 %609
        %v611 = vsel %vm585, %v580, 0.0
        %612 = vadd.xlane.f32.xlu0 %v611
        %v613 = vpop.xlane.xlu0 %612
        %v614 = vmul.f32 %v604, %v290
        %v615 = vmul.f32 %v607, %v290
        %v616 = vmul.f32 %v610, %v290
        %v617 = vmul.f32 %v613, %v290
        %619 = vset.pattern.permute.xlu0 2
        %620 = vperm.xlu0 %619, %v581
        %v621 = vpop.permute.xlu0 %620
        %624 = vset.pattern.permute.xlu0 2
        %625 = vperm.xlu0 %624, %v582
        %v626 = vpop.permute.xlu0 %625
        %629 = vset.pattern.permute.xlu0 2
        %630 = vperm.xlu0 %629, %v583
        %v631 = vpop.permute.xlu0 %630
        %634 = vset.pattern.permute.xlu0 2
        %635 = vperm.xlu0 %634, %v584
        %v636 = vpop.permute.xlu0 %635
        %v638 = vmul.f32 %v557, %v621
        %v639 = vmul.f32 %v558, %v626
        %v640 = vmul.f32 %v559, %v631
        %v641 = vmul.f32 %v560, %v636
        %v642 = vsub.f32 %v638, %v598
        %v643 = vsub.f32 %v639, %v599
        %v644 = vsub.f32 %v640, %v600
        %v645 = vsub.f32 %v641, %v601
        %v646 = vmul.f32 %v577, %v621
        %v647 = vmul.f32 %v578, %v626
        %v648 = vmul.f32 %v579, %v631
        %v649 = vmul.f32 %v580, %v636
        %v650 = vsub.f32 %v646, %v614
        %v651 = vsub.f32 %v647, %v615
        %v652 = vsub.f32 %v648, %v616
        %v653 = vsub.f32 %v649, %v617
        %654 = vset.pattern.permute.xlu0 0
        %655 = vperm.xlu0 %654, %v581
        %v656 = vpop.permute.xlu0 %655
        %658 = vset.pattern.permute.xlu0 0
        %659 = vperm.xlu0 %658, %v582
        %v660 = vpop.permute.xlu0 %659
        %662 = vset.pattern.permute.xlu0 0
        %663 = vperm.xlu0 %662, %v583
        %v664 = vpop.permute.xlu0 %663
        %666 = vset.pattern.permute.xlu0 0
        %667 = vperm.xlu0 %666, %v584
        %v668 = vpop.permute.xlu0 %667
        %v670 = vmul.f32 %v656, %v642
        %v671 = vmul.f32 %v660, %v643
        %v672 = vmul.f32 %v664, %v644
        %v673 = vmul.f32 %v668, %v645
        %674 = vset.pattern.permute.xlu0 1
        %675 = vperm.xlu0 %674, %v581
        %v676 = vpop.permute.xlu0 %675
        %678 = vset.pattern.permute.xlu0 1
        %679 = vperm.xlu0 %678, %v582
        %v680 = vpop.permute.xlu0 %679
        %682 = vset.pattern.permute.xlu0 1
        %683 = vperm.xlu0 %682, %v583
        %v684 = vpop.permute.xlu0 %683
        %686 = vset.pattern.permute.xlu0 1
        %687 = vperm.xlu0 %686, %v584
        %v688 = vpop.permute.xlu0 %687
        %v690 = vmul.f32 %v676, %v650
        %v691 = vmul.f32 %v680, %v651
        %v692 = vmul.f32 %v684, %v652
        %v693 = vmul.f32 %v688, %v653
        %v694 = vsub.f32 %v670, %v690
        %v695 = vsub.f32 %v671, %v691
        %v696 = vsub.f32 %v672, %v692
        %v697 = vsub.f32 %v673, %v693
        %v698 = vadd.f32 %v694, %v598
        %v699 = vadd.f32 %v695, %v599
        %v700 = vadd.f32 %v696, %v600
        %v701 = vadd.f32 %v697, %v601
        %v702 = vmul.f32 %v676, %v642
        %v703 = vmul.f32 %v680, %v643
        %v704 = vmul.f32 %v684, %v644
        %v705 = vmul.f32 %v688, %v645
        %v706 = vmul.f32 %v656, %v650
        %v707 = vmul.f32 %v660, %v651
        %v708 = vmul.f32 %v664, %v652
        %v709 = vmul.f32 %v668, %v653
        %v710 = vadd.f32 %v702, %v706
        %v711 = vadd.f32 %v703, %v707
        %v712 = vadd.f32 %v704, %v708
        %v713 = vadd.f32 %v705, %v709
        %v714 = vadd.f32 %v710, %v614
        %v715 = vadd.f32 %v711, %v615
        %v716 = vadd.f32 %v712, %v616
        %v717 = vadd.f32 %v713, %v617
        %v718 = vadd.f32 %v598, %v581
        %v719 = vadd.f32 %v599, %v582
        %v720 = vadd.f32 %v600, %v583
        %v721 = vadd.f32 %v601, %v584
        %v722 = vsel %vm585, %v698, 0.0
        %723 = vadd.xlane.f32.xlu0 %v722
        %v724 = vpop.xlane.xlu0 %723
        %v725 = vsel %vm585, %v699, 0.0
        %726 = vadd.xlane.f32.xlu0 %v725
        %v727 = vpop.xlane.xlu0 %726
        %v728 = vsel %vm585, %v700, 0.0
        %729 = vadd.xlane.f32.xlu0 %v728
        %v730 = vpop.xlane.xlu0 %729
        %v731 = vsel %vm585, %v701, 0.0
        %732 = vadd.xlane.f32.xlu0 %v731
        %v733 = vpop.xlane.xlu0 %732
        %v734 = vmul.f32 %v724, %v290
        %v735 = vmul.f32 %v727, %v290
        %v736 = vmul.f32 %v730, %v290
        %v737 = vmul.f32 %v733, %v290
        %v738 = vsub.f32 %v718, %v734
        %v739 = vsub.f32 %v719, %v735
        %v740 = vsub.f32 %v720, %v736
        %v741 = vsub.f32 %v721, %v737
        %743 = vset.pattern.permute.xlu0 3
        %744 = vperm.xlu0 %743, %v738
        %v745 = vpop.permute.xlu0 %744
        %748 = vset.pattern.permute.xlu0 3
        %749 = vperm.xlu0 %748, %v739
        %v750 = vpop.permute.xlu0 %749
        %753 = vset.pattern.permute.xlu0 3
        %754 = vperm.xlu0 %753, %v740
        %v755 = vpop.permute.xlu0 %754
        %758 = vset.pattern.permute.xlu0 3
        %759 = vperm.xlu0 %758, %v741
        %v760 = vpop.permute.xlu0 %759
        %v762 = vadd.f32 %v698, %v745
        %v763 = vadd.f32 %v699, %v750
        %v764 = vadd.f32 %v700, %v755
        %v765 = vadd.f32 %v701, %v760
        %v766 = vadd.f32 %v614, %v581
        %v767 = vadd.f32 %v615, %v582
        %v768 = vadd.f32 %v616, %v583
        %v769 = vadd.f32 %v617, %v584
        %v770 = vsel %vm585, %v714, 0.0
        %771 = vadd.xlane.f32.xlu0 %v770
        %v772 = vpop.xlane.xlu0 %771
        %v773 = vsel %vm585, %v715, 0.0
        %774 = vadd.xlane.f32.xlu0 %v773
        %v775 = vpop.xlane.xlu0 %774
        %v776 = vsel %vm585, %v716, 0.0
        %777 = vadd.xlane.f32.xlu0 %v776
        %v778 = vpop.xlane.xlu0 %777
        %v779 = vsel %vm585, %v717, 0.0
        %780 = vadd.xlane.f32.xlu0 %v779
        %v781 = vpop.xlane.xlu0 %780
        %v782 = vmul.f32 %v772, %v290
        %v783 = vmul.f32 %v775, %v290
        %v784 = vmul.f32 %v778, %v290
        %v785 = vmul.f32 %v781, %v290
        %v786 = vsub.f32 %v766, %v782
        %v787 = vsub.f32 %v767, %v783
        %v788 = vsub.f32 %v768, %v784
        %v789 = vsub.f32 %v769, %v785
        %791 = vset.pattern.permute.xlu0 4
        %792 = vperm.xlu0 %791, %v786
        %v793 = vpop.permute.xlu0 %792
        %796 = vset.pattern.permute.xlu0 4
        %797 = vperm.xlu0 %796, %v787
        %v798 = vpop.permute.xlu0 %797
        %801 = vset.pattern.permute.xlu0 4
        %802 = vperm.xlu0 %801, %v788
        %v803 = vpop.permute.xlu0 %802
        %806 = vset.pattern.permute.xlu0 4
        %807 = vperm.xlu0 %806, %v789
        %v808 = vpop.permute.xlu0 %807
        %v810 = vadd.f32 %v714, %v793
        %v811 = vadd.f32 %v715, %v798
        %v812 = vadd.f32 %v716, %v803
        %v813 = vadd.f32 %v717, %v808
        %v814 = vcvt.f32.s32.to.zero.pseudo %v762
        %v815 = vcvt.f32.s32.to.zero.pseudo %v763
        %v816 = vcvt.f32.s32.to.zero.pseudo %v764
        %v817 = vcvt.f32.s32.to.zero.pseudo %v765
        %vm818 = vcmp.gt.s32.totalorder %v814, 0
        %v819 = vsel %vm818, %v814, 0
        %vm820 = vcmp.gt.s32.totalorder %v815, 0
        %v821 = vsel %vm820, %v815, 0
        %vm822 = vcmp.gt.s32.totalorder %v816, 0
        %v823 = vsel %vm822, %v816, 0
        %vm824 = vcmp.gt.s32.totalorder %v817, 0
        %v825 = vsel %vm824, %v817, 0
        %vm826 = vcmp.lt.s32.totalorder %v819, 15
        %v827 = vsel %vm826, %v819, 15
        %vm828 = vcmp.lt.s32.totalorder %v821, 15
        %v829 = vsel %vm828, %v821, 15
        %vm830 = vcmp.lt.s32.totalorder %v823, 15
        %v831 = vsel %vm830, %v823, 15
        %vm832 = vcmp.lt.s32.totalorder %v825, 15
        %v833 = vsel %vm832, %v825, 15
        %v834 = vcvt.f32.s32.to.zero.pseudo %v810
        %v835 = vcvt.f32.s32.to.zero.pseudo %v811
        %v836 = vcvt.f32.s32.to.zero.pseudo %v812
        %v837 = vcvt.f32.s32.to.zero.pseudo %v813
        %vm838 = vcmp.gt.s32.totalorder %v834, 0
        %v839 = vsel %vm838, %v834, 0
        %vm840 = vcmp.gt.s32.totalorder %v835, 0
        %v841 = vsel %vm840, %v835, 0
        %vm842 = vcmp.gt.s32.totalorder %v836, 0
        %v843 = vsel %vm842, %v836, 0
        %vm844 = vcmp.gt.s32.totalorder %v837, 0
        %v845 = vsel %vm844, %v837, 0
        %vm846 = vcmp.lt.s32.totalorder %v839, 15
        %v847 = vsel %vm846, %v839, 15
        %vm848 = vcmp.lt.s32.totalorder %v841, 15
        %v849 = vsel %vm848, %v841, 15
        %vm850 = vcmp.lt.s32.totalorder %v843, 15
        %v851 = vsel %vm850, %v843, 15
        %vm852 = vcmp.lt.s32.totalorder %v845, 15
        %v853 = vsel %vm852, %v845, 15
        %v854 = vmul.u32 %v847, 16
        %v855 = vmul.u32 %v849, 16
        %v856 = vmul.u32 %v851, 16
        %v857 = vmul.u32 %v853, 16
        %v858 = vadd.s32 %v854, %v827
        %v859 = vadd.s32 %v855, %v829
        %v860 = vadd.s32 %v856, %v831
        %v861 = vadd.s32 %v857, %v833
        %v862 = vld [vmem:[%s225] ss:$8 sm:$0x3]
        %863 = vset.pattern.permute.xlu0 0
        %864 = vperm.xlu0 %863, %v858
        %v865 = vpop.permute.xlu0 %864
        %866 = vset.pattern.permute.xlu0 0
        %867 = vperm.xlu0 %866, %v859
        %v868 = vpop.permute.xlu0 %867
        %869 = vset.pattern.permute.xlu0 0
        %870 = vperm.xlu0 %869, %v860
        %v871 = vpop.permute.xlu0 %870
        %872 = vset.pattern.permute.xlu0 0
        %873 = vperm.xlu0 %872, %v861
        %v874 = vpop.permute.xlu0 %873
        %vm875 = vcmp.eq.s32.totalorder %v239, %v865
        %vm876 = vcmp.eq.s32.totalorder %v240, %v865
        %vm877 = vcmp.eq.s32.totalorder %v239, %v868
        %vm878 = vcmp.eq.s32.totalorder %v240, %v868
        %vm879 = vcmp.eq.s32.totalorder %v239, %v871
        %vm880 = vcmp.eq.s32.totalorder %v240, %v871
        %vm881 = vcmp.eq.s32.totalorder %v239, %v874
        %vm882 = vcmp.eq.s32.totalorder %v240, %v874
        %v884 = vperm.slane %v862, 0
        %v885 = vperm.slane %v862, 1
        %v888 = vsel %vm875, %v884, 0.0
        %v889 = vsel %vm876, %v885, 0.0
        %v890 = vsel %vm877, %v884, 0.0
        %v891 = vsel %vm878, %v885, 0.0
        %v892 = vsel %vm879, %v884, 0.0
        %v893 = vsel %vm880, %v885, 0.0
        %v894 = vsel %vm881, %v884, 0.0
        %v895 = vsel %vm882, %v885, 0.0
        %v896 = vadd.f32 %v888, %v889
        %897 = vadd.xlane.f32.xlu0 %v896
        %v898 = vpop.xlane.xlu0 %897
        %v899 = vadd.f32 %v890, %v891
        %900 = vadd.xlane.f32.xlu0 %v899
        %v901 = vpop.xlane.xlu0 %900
        %v902 = vadd.f32 %v892, %v893
        %903 = vadd.xlane.f32.xlu0 %v902
        %v904 = vpop.xlane.xlu0 %903
        %v905 = vadd.f32 %v894, %v895
        %906 = vadd.xlane.f32.xlu0 %v905
        %v907 = vpop.xlane.xlu0 %906
        %s908 = scalar_lea.vmem %s225, 1
        %v909 = vld [vmem:[%s908] ss:$8 sm:$0x3]
        %910 = vset.pattern.permute.xlu0 1
        %911 = vperm.xlu0 %910, %v858
        %v912 = vpop.permute.xlu0 %911
        %913 = vset.pattern.permute.xlu0 1
        %914 = vperm.xlu0 %913, %v859
        %v915 = vpop.permute.xlu0 %914
        %916 = vset.pattern.permute.xlu0 1
        %917 = vperm.xlu0 %916, %v860
        %v918 = vpop.permute.xlu0 %917
        %919 = vset.pattern.permute.xlu0 1
        %920 = vperm.xlu0 %919, %v861
        %v921 = vpop.permute.xlu0 %920
        %vm922 = vcmp.eq.s32.totalorder %v239, %v912
        %vm923 = vcmp.eq.s32.totalorder %v240, %v912
        %vm924 = vcmp.eq.s32.totalorder %v239, %v915
        %vm925 = vcmp.eq.s32.totalorder %v240, %v915
        %vm926 = vcmp.eq.s32.totalorder %v239, %v918
        %vm927 = vcmp.eq.s32.totalorder %v240, %v918
        %vm928 = vcmp.eq.s32.totalorder %v239, %v921
        %vm929 = vcmp.eq.s32.totalorder %v240, %v921
        %v931 = vperm.slane %v909, 0
        %v932 = vperm.slane %v909, 1
        %v935 = vsel %vm922, %v931, 0.0
        %v936 = vsel %vm923, %v932, 0.0
        %v937 = vsel %vm924, %v931, 0.0
        %v938 = vsel %vm925, %v932, 0.0
        %v939 = vsel %vm926, %v931, 0.0
        %v940 = vsel %vm927, %v932, 0.0
        %v941 = vsel %vm928, %v931, 0.0
        %v942 = vsel %vm929, %v932, 0.0
        %v943 = vadd.f32 %v935, %v936
        %944 = vadd.xlane.f32.xlu0 %v943
        %v945 = vpop.xlane.xlu0 %944
        %v946 = vadd.f32 %v937, %v938
        %947 = vadd.xlane.f32.xlu0 %v946
        %v948 = vpop.xlane.xlu0 %947
        %v949 = vadd.f32 %v939, %v940
        %950 = vadd.xlane.f32.xlu0 %v949
        %v951 = vpop.xlane.xlu0 %950
        %v952 = vadd.f32 %v941, %v942
        %953 = vadd.xlane.f32.xlu0 %v952
        %v954 = vpop.xlane.xlu0 %953
        %v955 = vmul.f32 %v898, %v945
        %v956 = vmul.f32 %v901, %v948
        %v957 = vmul.f32 %v904, %v951
        %v958 = vmul.f32 %v907, %v954
        %s959 = scalar_lea.vmem %s225, 2
        %v960 = vld [vmem:[%s959] ss:$8 sm:$0x3]
        %961 = vset.pattern.permute.xlu0 2
        %962 = vperm.xlu0 %961, %v858
        %v963 = vpop.permute.xlu0 %962
        %964 = vset.pattern.permute.xlu0 2
        %965 = vperm.xlu0 %964, %v859
        %v966 = vpop.permute.xlu0 %965
        %967 = vset.pattern.permute.xlu0 2
        %968 = vperm.xlu0 %967, %v860
        %v969 = vpop.permute.xlu0 %968
        %970 = vset.pattern.permute.xlu0 2
        %971 = vperm.xlu0 %970, %v861
        %v972 = vpop.permute.xlu0 %971
        %vm973 = vcmp.eq.s32.totalorder %v239, %v963
        %vm974 = vcmp.eq.s32.totalorder %v240, %v963
        %vm975 = vcmp.eq.s32.totalorder %v239, %v966
        %vm976 = vcmp.eq.s32.totalorder %v240, %v966
        %vm977 = vcmp.eq.s32.totalorder %v239, %v969
        %vm978 = vcmp.eq.s32.totalorder %v240, %v969
        %vm979 = vcmp.eq.s32.totalorder %v239, %v972
        %vm980 = vcmp.eq.s32.totalorder %v240, %v972
        %v982 = vperm.slane %v960, 0
        %v983 = vperm.slane %v960, 1
        %v986 = vsel %vm973, %v982, 0.0
        %v987 = vsel %vm974, %v983, 0.0
        %v988 = vsel %vm975, %v982, 0.0
        %v989 = vsel %vm976, %v983, 0.0
        %v990 = vsel %vm977, %v982, 0.0
        %v991 = vsel %vm978, %v983, 0.0
        %v992 = vsel %vm979, %v982, 0.0
        %v993 = vsel %vm980, %v983, 0.0
        %v994 = vadd.f32 %v986, %v987
        %995 = vadd.xlane.f32.xlu0 %v994
        %v996 = vpop.xlane.xlu0 %995
        %v997 = vadd.f32 %v988, %v989
        %998 = vadd.xlane.f32.xlu0 %v997
        %v999 = vpop.xlane.xlu0 %998
        %v1000 = vadd.f32 %v990, %v991
        %1001 = vadd.xlane.f32.xlu0 %v1000
        %v1002 = vpop.xlane.xlu0 %1001
        %v1003 = vadd.f32 %v992, %v993
        %1004 = vadd.xlane.f32.xlu0 %v1003
        %v1005 = vpop.xlane.xlu0 %1004
        %v1006 = vmul.f32 %v955, %v996
        %v1007 = vmul.f32 %v956, %v999
        %v1008 = vmul.f32 %v957, %v1002
        %v1009 = vmul.f32 %v958, %v1005
        %s1010 = scalar_lea.vmem %s225, 3
        %v1011 = vld [vmem:[%s1010] ss:$8 sm:$0x3]
        %1012 = vset.pattern.permute.xlu0 3
        %1013 = vperm.xlu0 %1012, %v858
        %v1014 = vpop.permute.xlu0 %1013
        %1015 = vset.pattern.permute.xlu0 3
        %1016 = vperm.xlu0 %1015, %v859
        %v1017 = vpop.permute.xlu0 %1016
        %1018 = vset.pattern.permute.xlu0 3
        %1019 = vperm.xlu0 %1018, %v860
        %v1020 = vpop.permute.xlu0 %1019
        %1021 = vset.pattern.permute.xlu0 3
        %1022 = vperm.xlu0 %1021, %v861
        %v1023 = vpop.permute.xlu0 %1022
        %vm1024 = vcmp.eq.s32.totalorder %v239, %v1014
        %vm1025 = vcmp.eq.s32.totalorder %v240, %v1014
        %vm1026 = vcmp.eq.s32.totalorder %v239, %v1017
        %vm1027 = vcmp.eq.s32.totalorder %v240, %v1017
        %vm1028 = vcmp.eq.s32.totalorder %v239, %v1020
        %vm1029 = vcmp.eq.s32.totalorder %v240, %v1020
        %vm1030 = vcmp.eq.s32.totalorder %v239, %v1023
        %vm1031 = vcmp.eq.s32.totalorder %v240, %v1023
        %v1033 = vperm.slane %v1011, 0
        %v1034 = vperm.slane %v1011, 1
        %v1037 = vsel %vm1024, %v1033, 0.0
        %v1038 = vsel %vm1025, %v1034, 0.0
        %v1039 = vsel %vm1026, %v1033, 0.0
        %v1040 = vsel %vm1027, %v1034, 0.0
        %v1041 = vsel %vm1028, %v1033, 0.0
        %v1042 = vsel %vm1029, %v1034, 0.0
        %v1043 = vsel %vm1030, %v1033, 0.0
        %v1044 = vsel %vm1031, %v1034, 0.0
        %v1045 = vadd.f32 %v1037, %v1038
        %1046 = vadd.xlane.f32.xlu0 %v1045
        %v1047 = vpop.xlane.xlu0 %1046
        %v1048 = vadd.f32 %v1039, %v1040
        %1049 = vadd.xlane.f32.xlu0 %v1048
        %v1050 = vpop.xlane.xlu0 %1049
        %v1051 = vadd.f32 %v1041, %v1042
        %1052 = vadd.xlane.f32.xlu0 %v1051
        %v1053 = vpop.xlane.xlu0 %1052
        %v1054 = vadd.f32 %v1043, %v1044
        %1055 = vadd.xlane.f32.xlu0 %v1054
        %v1056 = vpop.xlane.xlu0 %1055
        %v1057 = vmul.f32 %v1006, %v1047
        %v1058 = vmul.f32 %v1007, %v1050
        %v1059 = vmul.f32 %v1008, %v1053
        %v1060 = vmul.f32 %v1009, %v1056
        %s1061 = scalar_lea.vmem %s225, 4
        %v1062 = vld [vmem:[%s1061] ss:$8 sm:$0x3]
        %1063 = vset.pattern.permute.xlu0 4
        %1064 = vperm.xlu0 %1063, %v858
        %v1065 = vpop.permute.xlu0 %1064
        %1066 = vset.pattern.permute.xlu0 4
        %1067 = vperm.xlu0 %1066, %v859
        %v1068 = vpop.permute.xlu0 %1067
        %1069 = vset.pattern.permute.xlu0 4
        %1070 = vperm.xlu0 %1069, %v860
        %v1071 = vpop.permute.xlu0 %1070
        %1072 = vset.pattern.permute.xlu0 4
        %1073 = vperm.xlu0 %1072, %v861
        %v1074 = vpop.permute.xlu0 %1073
        %vm1075 = vcmp.eq.s32.totalorder %v239, %v1065
        %vm1076 = vcmp.eq.s32.totalorder %v240, %v1065
        %vm1077 = vcmp.eq.s32.totalorder %v239, %v1068
        %vm1078 = vcmp.eq.s32.totalorder %v240, %v1068
        %vm1079 = vcmp.eq.s32.totalorder %v239, %v1071
        %vm1080 = vcmp.eq.s32.totalorder %v240, %v1071
        %vm1081 = vcmp.eq.s32.totalorder %v239, %v1074
        %vm1082 = vcmp.eq.s32.totalorder %v240, %v1074
        %v1084 = vperm.slane %v1062, 0
        %v1085 = vperm.slane %v1062, 1
        %v1088 = vsel %vm1075, %v1084, 0.0
        %v1089 = vsel %vm1076, %v1085, 0.0
        %v1090 = vsel %vm1077, %v1084, 0.0
        %v1091 = vsel %vm1078, %v1085, 0.0
        %v1092 = vsel %vm1079, %v1084, 0.0
        %v1093 = vsel %vm1080, %v1085, 0.0
        %v1094 = vsel %vm1081, %v1084, 0.0
        %v1095 = vsel %vm1082, %v1085, 0.0
        %v1096 = vadd.f32 %v1088, %v1089
        %1097 = vadd.xlane.f32.xlu0 %v1096
        %v1098 = vpop.xlane.xlu0 %1097
        %v1099 = vadd.f32 %v1090, %v1091
        %1100 = vadd.xlane.f32.xlu0 %v1099
        %v1101 = vpop.xlane.xlu0 %1100
        %v1102 = vadd.f32 %v1092, %v1093
        %1103 = vadd.xlane.f32.xlu0 %v1102
        %v1104 = vpop.xlane.xlu0 %1103
        %v1105 = vadd.f32 %v1094, %v1095
        %1106 = vadd.xlane.f32.xlu0 %v1105
        %v1107 = vpop.xlane.xlu0 %1106
        %v1108 = vmul.f32 %v1057, %v1098
        %v1109 = vmul.f32 %v1058, %v1101
        %v1110 = vmul.f32 %v1059, %v1104
        %v1111 = vmul.f32 %v1060, %v1107
        %s1112 = scalar_lea.vmem %s225, 5
        %v1113 = vld [vmem:[%s1112] ss:$8 sm:$0x3]
        %1114 = vset.pattern.permute.xlu0 5
        %1115 = vperm.xlu0 %1114, %v858
        %v1116 = vpop.permute.xlu0 %1115
        %1117 = vset.pattern.permute.xlu0 5
        %1118 = vperm.xlu0 %1117, %v859
        %v1119 = vpop.permute.xlu0 %1118
        %1120 = vset.pattern.permute.xlu0 5
        %1121 = vperm.xlu0 %1120, %v860
        %v1122 = vpop.permute.xlu0 %1121
        %1123 = vset.pattern.permute.xlu0 5
        %1124 = vperm.xlu0 %1123, %v861
        %v1125 = vpop.permute.xlu0 %1124
        %vm1126 = vcmp.eq.s32.totalorder %v239, %v1116
        %vm1127 = vcmp.eq.s32.totalorder %v240, %v1116
        %vm1128 = vcmp.eq.s32.totalorder %v239, %v1119
        %vm1129 = vcmp.eq.s32.totalorder %v240, %v1119
        %vm1130 = vcmp.eq.s32.totalorder %v239, %v1122
        %vm1131 = vcmp.eq.s32.totalorder %v240, %v1122
        %vm1132 = vcmp.eq.s32.totalorder %v239, %v1125
        %vm1133 = vcmp.eq.s32.totalorder %v240, %v1125
        %v1135 = vperm.slane %v1113, 0
        %v1136 = vperm.slane %v1113, 1
        %v1139 = vsel %vm1126, %v1135, 0.0
        %v1140 = vsel %vm1127, %v1136, 0.0
        %v1141 = vsel %vm1128, %v1135, 0.0
        %v1142 = vsel %vm1129, %v1136, 0.0
        %v1143 = vsel %vm1130, %v1135, 0.0
        %v1144 = vsel %vm1131, %v1136, 0.0
        %v1145 = vsel %vm1132, %v1135, 0.0
        %v1146 = vsel %vm1133, %v1136, 0.0
        %v1147 = vadd.f32 %v1139, %v1140
        %1148 = vadd.xlane.f32.xlu0 %v1147
        %v1149 = vpop.xlane.xlu0 %1148
        %v1150 = vadd.f32 %v1141, %v1142
        %1151 = vadd.xlane.f32.xlu0 %v1150
        %v1152 = vpop.xlane.xlu0 %1151
        %v1153 = vadd.f32 %v1143, %v1144
        %1154 = vadd.xlane.f32.xlu0 %v1153
        %v1155 = vpop.xlane.xlu0 %1154
        %v1156 = vadd.f32 %v1145, %v1146
        %1157 = vadd.xlane.f32.xlu0 %v1156
        %v1158 = vpop.xlane.xlu0 %1157
        %v1159 = vmul.f32 %v1108, %v1149
        %v1160 = vmul.f32 %v1109, %v1152
        %v1161 = vmul.f32 %v1110, %v1155
        %v1162 = vmul.f32 %v1111, %v1158
        %s1163 = scalar_lea.vmem %s225, 6
        %v1164 = vld [vmem:[%s1163] ss:$8 sm:$0x3]
        %1165 = vset.pattern.permute.xlu0 6
        %1166 = vperm.xlu0 %1165, %v858
        %v1167 = vpop.permute.xlu0 %1166
        %1168 = vset.pattern.permute.xlu0 6
        %1169 = vperm.xlu0 %1168, %v859
        %v1170 = vpop.permute.xlu0 %1169
        %1171 = vset.pattern.permute.xlu0 6
        %1172 = vperm.xlu0 %1171, %v860
        %v1173 = vpop.permute.xlu0 %1172
        %1174 = vset.pattern.permute.xlu0 6
        %1175 = vperm.xlu0 %1174, %v861
        %v1176 = vpop.permute.xlu0 %1175
        %vm1177 = vcmp.eq.s32.totalorder %v239, %v1167
        %vm1178 = vcmp.eq.s32.totalorder %v240, %v1167
        %vm1179 = vcmp.eq.s32.totalorder %v239, %v1170
        %vm1180 = vcmp.eq.s32.totalorder %v240, %v1170
        %vm1181 = vcmp.eq.s32.totalorder %v239, %v1173
        %vm1182 = vcmp.eq.s32.totalorder %v240, %v1173
        %vm1183 = vcmp.eq.s32.totalorder %v239, %v1176
        %vm1184 = vcmp.eq.s32.totalorder %v240, %v1176
        %v1186 = vperm.slane %v1164, 0
        %v1187 = vperm.slane %v1164, 1
        %v1190 = vsel %vm1177, %v1186, 0.0
        %v1191 = vsel %vm1178, %v1187, 0.0
        %v1192 = vsel %vm1179, %v1186, 0.0
        %v1193 = vsel %vm1180, %v1187, 0.0
        %v1194 = vsel %vm1181, %v1186, 0.0
        %v1195 = vsel %vm1182, %v1187, 0.0
        %v1196 = vsel %vm1183, %v1186, 0.0
        %v1197 = vsel %vm1184, %v1187, 0.0
        %v1198 = vadd.f32 %v1190, %v1191
        %1199 = vadd.xlane.f32.xlu0 %v1198
        %v1200 = vpop.xlane.xlu0 %1199
        %v1201 = vadd.f32 %v1192, %v1193
        %1202 = vadd.xlane.f32.xlu0 %v1201
        %v1203 = vpop.xlane.xlu0 %1202
        %v1204 = vadd.f32 %v1194, %v1195
        %1205 = vadd.xlane.f32.xlu0 %v1204
        %v1206 = vpop.xlane.xlu0 %1205
        %v1207 = vadd.f32 %v1196, %v1197
        %1208 = vadd.xlane.f32.xlu0 %v1207
        %v1209 = vpop.xlane.xlu0 %1208
        %v1210 = vmul.f32 %v1159, %v1200
        %v1211 = vmul.f32 %v1160, %v1203
        %v1212 = vmul.f32 %v1161, %v1206
        %v1213 = vmul.f32 %v1162, %v1209
        %s1214 = scalar_lea.vmem %s225, 7
        %v1215 = vld [vmem:[%s1214] ss:$8 sm:$0x3]
        %1216 = vset.pattern.permute.xlu0 7
        %1217 = vperm.xlu0 %1216, %v858
        %v1218 = vpop.permute.xlu0 %1217
        %1219 = vset.pattern.permute.xlu0 7
        %1220 = vperm.xlu0 %1219, %v859
        %v1221 = vpop.permute.xlu0 %1220
        %1222 = vset.pattern.permute.xlu0 7
        %1223 = vperm.xlu0 %1222, %v860
        %v1224 = vpop.permute.xlu0 %1223
        %1225 = vset.pattern.permute.xlu0 7
        %1226 = vperm.xlu0 %1225, %v861
        %v1227 = vpop.permute.xlu0 %1226
        %vm1228 = vcmp.eq.s32.totalorder %v239, %v1218
        %vm1229 = vcmp.eq.s32.totalorder %v240, %v1218
        %vm1230 = vcmp.eq.s32.totalorder %v239, %v1221
        %vm1231 = vcmp.eq.s32.totalorder %v240, %v1221
        %vm1232 = vcmp.eq.s32.totalorder %v239, %v1224
        %vm1233 = vcmp.eq.s32.totalorder %v240, %v1224
        %vm1234 = vcmp.eq.s32.totalorder %v239, %v1227
        %vm1235 = vcmp.eq.s32.totalorder %v240, %v1227
        %v1237 = vperm.slane %v1215, 0
        %v1238 = vperm.slane %v1215, 1
        %v1241 = vsel %vm1228, %v1237, 0.0
        %v1242 = vsel %vm1229, %v1238, 0.0
        %v1243 = vsel %vm1230, %v1237, 0.0
        %v1244 = vsel %vm1231, %v1238, 0.0
        %v1245 = vsel %vm1232, %v1237, 0.0
        %v1246 = vsel %vm1233, %v1238, 0.0
        %v1247 = vsel %vm1234, %v1237, 0.0
        %v1248 = vsel %vm1235, %v1238, 0.0
        %v1249 = vadd.f32 %v1241, %v1242
        %1250 = vadd.xlane.f32.xlu0 %v1249
        %v1251 = vpop.xlane.xlu0 %1250
        %v1252 = vadd.f32 %v1243, %v1244
        %1253 = vadd.xlane.f32.xlu0 %v1252
        %v1254 = vpop.xlane.xlu0 %1253
        %v1255 = vadd.f32 %v1245, %v1246
        %1256 = vadd.xlane.f32.xlu0 %v1255
        %v1257 = vpop.xlane.xlu0 %1256
        %v1258 = vadd.f32 %v1247, %v1248
        %1259 = vadd.xlane.f32.xlu0 %v1258
        %v1260 = vpop.xlane.xlu0 %1259
        %v1261 = vmul.f32 %v1210, %v1251
        %v1262 = vmul.f32 %v1211, %v1254
        %v1263 = vmul.f32 %v1212, %v1257
        %v1264 = vmul.f32 %v1213, %v1260
        %v1265 = vmax.f32 %v1261, %v1262
        %v1266 = vmax.f32 %v1263, %v1264
        %v1267 = vmax.f32 %v1265, %v1266
        %v1268 = vrot.slane %v1267, 4
        %v1269 = vmax.f32 %v1267, %v1268
        %v1270 = vrot.slane %v1269, 2
        %v1271 = vmax.f32 %v1269, %v1270
        %v1272 = vrot.slane %v1271, 1
        %v1273 = vmax.f32 %v1271, %v1272
        %v1274 = vlaneseq
        %v1275 = vshrl.u32 %v1274, 7
        %v1276 = vadd.s32 %v1275, 8
        %v1277 = vadd.s32 %v1275, 16
        %v1278 = vadd.s32 %v1275, 24
        %vm1279 = vcmp.eq.f32.partialorder %v1261, %v1273
        %vm1280 = vcmp.eq.f32.partialorder %v1262, %v1273
        %vm1281 = vcmp.eq.f32.partialorder %v1263, %v1273
        %vm1282 = vcmp.eq.f32.partialorder %v1264, %v1273
        %v1283 = vsel %vm1279, %v1275, 32
        %v1284 = vsel %vm1280, %v1276, 32
        %v1285 = vsel %vm1281, %v1277, 32
        %v1286 = vsel %vm1282, %v1278, 32
        %vm1287 = vcmp.lt.s32.totalorder %v1283, %v1284
        %v1288 = vsel %vm1287, %v1283, %v1284
        %vm1289 = vcmp.lt.s32.totalorder %v1285, %v1286
        %v1290 = vsel %vm1289, %v1285, %v1286
        %vm1291 = vcmp.lt.s32.totalorder %v1288, %v1290
        %v1292 = vsel %vm1291, %v1288, %v1290
        %v1293 = vrot.slane %v1292, 4
        %vm1294 = vcmp.lt.s32.totalorder %v1292, %v1293
        %v1295 = vsel %vm1294, %v1292, %v1293
        %v1296 = vrot.slane %v1295, 2
        %vm1297 = vcmp.lt.s32.totalorder %v1295, %v1296
        %v1298 = vsel %vm1297, %v1295, %v1296
        %v1299 = vrot.slane %v1298, 1
        %vm1300 = vcmp.lt.s32.totalorder %v1298, %v1299
        %v1301 = vsel %vm1300, %v1298, %v1299
        %vm1302 = vcmp.eq.s32.totalorder %v1275, %v1301
        %vm1303 = vcmp.eq.s32.totalorder %v1276, %v1301
        %vm1304 = vcmp.eq.s32.totalorder %v1277, %v1301
        %vm1305 = vcmp.eq.s32.totalorder %v1278, %v1301
        %v1306 = vsel %vm1302, 1, 0
        %v1307 = vsel %vm1303, 1, 0
        %v1308 = vsel %vm1304, 1, 0
        %v1309 = vsel %vm1305, 1, 0
        %vm1310 = vcmp.eq.s32.totalorder %v1306, 1
        %vm1311 = vcmp.eq.s32.totalorder %v1307, 1
        %vm1312 = vcmp.eq.s32.totalorder %v1308, 1
        %vm1313 = vcmp.eq.s32.totalorder %v1309, 1
        %v1314 = vsel %vm1310, %v827, 0
        %v1315 = vsel %vm1311, %v829, 0
        %v1316 = vsel %vm1312, %v831, 0
        %v1317 = vsel %vm1313, %v833, 0
        %v1318 = vsel %vm585, %v1314, 0
        %v1319 = vsel %vm585, %v1315, 0
        %v1320 = vsel %vm585, %v1316, 0
        %v1321 = vsel %vm585, %v1317, 0
        %v1322 = vadd.s32 %v1318, %v1319
        %v1323 = vadd.s32 %v1320, %v1321
        %v1324 = vadd.s32 %v1322, %v1323
        %v1325 = vrot.slane %v1324, 4
        %v1326 = vadd.s32 %v1324, %v1325
        %v1327 = vrot.slane %v1326, 2
        %v1328 = vadd.s32 %v1326, %v1327
        %v1329 = vrot.slane %v1328, 1
        %v1330 = vadd.s32 %v1328, %v1329
        %v1331 = vsel %vm1310, %v847, 0
        %v1332 = vsel %vm1311, %v849, 0
        %v1333 = vsel %vm1312, %v851, 0
        %v1334 = vsel %vm1313, %v853, 0
        %v1335 = vsel %vm585, %v1331, 0
        %v1336 = vsel %vm585, %v1332, 0
        %v1337 = vsel %vm585, %v1333, 0
        %v1338 = vsel %vm585, %v1334, 0
        %v1339 = vadd.s32 %v1335, %v1336
        %v1340 = vadd.s32 %v1337, %v1338
        %v1341 = vadd.s32 %v1339, %v1340
        %v1342 = vrot.slane %v1341, 4
        %v1343 = vadd.s32 %v1341, %v1342
        %v1344 = vrot.slane %v1343, 2
        %v1345 = vadd.s32 %v1343, %v1344
        %v1346 = vrot.slane %v1345, 1
        %v1347 = vadd.s32 %v1345, %v1346
        %vm1348 = vcmask 1040384
        %v1349 = vsel %vm1348, %v1330, %v1347
        %v1350 = vsel %vm585, %v1349, 0
        %1351 = vst [vmem:[%s220] sm:$0x3] %v1350
        %s1352 = sand.u32 %s125, 1
        %s1353 = scalar_lea.sflag [#allocation3], %s1352
        %s1354 = sand.u32 %s125, 1
        %s1355 = smul.addr %s1354, 2
        %s1356 = scalar_lea.vmem [#allocation2], %s1355
        // Predicated region
        $region37: #{tpu_custom_call.1} parent=35 // pred_check
          %p1357 = pneg %p135
        $region38: #{tpu_custom_call.1} parent=35 // pred_check_branch
          %1359 = sbr.rel (%p1357) target = $region40
        $region39: #{tpu_custom_call.1} parent=35 // pred_region
          %1361 = vsyncadd %s1353, 0
          %s1362 = smul.addr %s18, 2
          %s1363 = scalar_lea.hbm %s4, %s1362
          %s1365 = sshll.u32 %s1356, 4
          %s1366 = int_to_ptr.vmem [resolvable:$true] %s1365
          %s1367 = sshll.u32 %s1363, 4
          %s1368 = int_to_ptr.hbm [resolvable:$true] %s1367
          %1370 = dma.vmem_to_hbm [thread:$0]  %s1366, 32, %s1368, %s1353
        $region40: #{tpu_custom_call.1} parent=35 // pred_fallthru
          _
      $region36: #{tpu_custom_call.1} parent=5 // pred_fallthru
        _
      %p1371 = scmp.le.s32.totalorder 2, %s13
      // Predicated region
      $region41: #{tpu_custom_call.1} parent=5 // pred_check
        %p1372 = pneg %p1371
      $region42: #{tpu_custom_call.1} parent=5 // pred_check_branch
        %1374 = sbr.rel (%p1372) target = $region44
      $region43: #{tpu_custom_call.1} parent=5 // pred_region
        %s1375 = ssub.s32 %s13, 2
        // Predicated region
        $region45: #{tpu_custom_call.1} parent=43 // pred_check
          %p1376 = pneg %p141
        $region46: #{tpu_custom_call.1} parent=43 // pred_check_branch
          %1378 = sbr.rel (%p1376) target = $region48
        $region47: #{tpu_custom_call.1} parent=43 // pred_region
          %s1379 = sand.u32 %s126, 1
          %s1380 = scalar_lea.sflag [#allocation3], %s1379
          %s1381 = sand.u32 %s126, 1
          %s1382 = smul.addr %s1381, 2
          %s1383 = scalar_lea.vmem [#allocation2], %s1382
          %1385 = dma.done %s1380, 32
        $region48: #{tpu_custom_call.1} parent=43 // pred_fallthru
          _
      $region44: #{tpu_custom_call.1} parent=5 // pred_fallthru
        _
    $region6: #{tpu_custom_call.1} parent=1 // loop_footer
      %s17 = sadd.s32 1, %s13
    $region7: #{tpu_custom_call.1} parent=1 // loop_footer_branch
      %12 = sbr.rel target = $region3
    $region8: #{tpu_custom_call.1} parent=1 // loop_exit
      _
    %1386 = vsyncpa [#allocation3], 1
    %s1387 = scalar_lea.sflag [#allocation3], 1
    %1388 = vsyncpa %s1387, 1

</llo_original>
